<compile_context>
chip_gen: v6e
topology: v6e:2x2x1
jax: 0.10.0
libtpu: 0.0.40
codegen_flags: <defaults>
</compile_context>

<pallas_src>
import functools

import jax
import jax.numpy as jnp
from jax.experimental import pallas as pl
from jax.experimental.pallas import tpu as pltpu


def _gelu_tanh(x):
    c = 0.7978845608028654  # sqrt(2/pi)
    return 0.5 * x * (1.0 + jnp.tanh(c * (x + 0.044715 * x * x * x)))


def _mlp_kernel(x_ref, mask_ref, w1_ref, b1_ref, wdw_ref, bdw_ref, w2_ref,
                b2_ref, out_ref, *, w):
    """Fused fc1 + depthwise 3x3 + GELU + fc2 for one batch tile.

    x_ref    : (bt, N, C_in)    activations, N == h*w tokens per image
    mask_ref : (bt*N, 9)        0/1 validity of each 3x3 tap per token (host-built)
    w1_ref   : (C_in, hidden)   fc1 weight (in x out)
    b1_ref   : (1, hidden)
    wdw_ref  : (9, hidden)      depthwise taps, row = (dy+1)*3 + (dx+1)
    bdw_ref  : (1, hidden)
    w2_ref   : (hidden, C_out)  fc2 weight (in x out)
    b2_ref   : (1, C_out)
    out_ref  : (bt, N, C_out)
    """
    bt, n_tok, c_in = x_ref.shape
    hid = w1_ref.shape[1]
    c_out = w2_ref.shape[1]
    m = bt * n_tok

    # ---- fc1: bf16 MXU operands, f32 accumulation -------------------------------
    x = x_ref[...].reshape(m, c_in).astype(jnp.bfloat16)
    h1 = jnp.dot(x, w1_ref[...].astype(jnp.bfloat16),
                 preferred_element_type=jnp.float32) + b1_ref[...]

    # ---- depthwise 3x3 (stride 1, pad 1): token-axis rolls + boundary masks -----
    # Token p (within a batch element) sits at spatial (i, j) = (p // w, p % w),
    # identical to the torch transpose(1,2).view(B,C,H,W) mapping.  Tap (dy, dx)
    # reads token p + dy*w + dx; out-of-image (and therefore any cross-batch wrap
    # of the roll) contributions are zeroed by the precomputed mask.
    acc = h1 * wdw_ref[4:5, :]                      # center tap initializes acc
    tap = 0
    for dy in (-1, 0, 1):
        for dx in (-1, 0, 1):
            if not (dy == 0 and dx == 0):
                s = dy * w + dx
                shifted = pltpu.roll(h1, (-s) % m, axis=0)   # shifted[p] = h1[p + s]
                acc = acc + (shifted * mask_ref[:, tap:tap + 1]) * wdw_ref[tap:tap + 1, :]
            tap += 1
    acc = acc + bdw_ref[...]

    # ---- GELU (tanh approx); dropout p=0 / eval is identity ----------------------
    act = _gelu_tanh(acc)

    # ---- fc2: bf16 MXU operands, f32 accumulation; lane-dense store --------------
    out = jnp.dot(act.astype(jnp.bfloat16), w2_ref[...].astype(jnp.bfloat16),
                  preferred_element_type=jnp.float32) + b2_ref[...]
    out_ref[...] = out.reshape(bt, n_tok, c_out).astype(out_ref.dtype)


def _vmem_bytes(block_b, n_tok, c_in, hid, c_out):
    """Rough per-step VMEM footprint (double-buffered blocks + live temporaries)."""
    f32 = 4
    m = block_b * n_tok
    io = 2 * m * (c_in + c_out) * f32                 # x / out blocks (double buffered)
    msk = 2 * m * 128 * f32                           # (m, 9) tap mask, lane-padded
    wts = 2 * (c_in * hid + hid * c_out + 16 * hid + 8 * c_out) * f32
    live = 6 * m * hid * f32                          # h1 / shifted / acc / act temps
    return io + msk + wts + live


def _pick_block_b(b, n_tok, c_in, hid, c_out, budget):
    """Largest divisor of b that fits the VMEM budget and keeps the grid >= 2."""
    best = 1
    for cand in range(1, b + 1):
        if b % cand:
            continue
        if b >= 2 and b // cand < 2:      # keep >= 2 grid steps (pipeline + v7x 2xTC)
            continue
        if _vmem_bytes(cand, n_tok, c_in, hid, c_out) > budget:
            continue
        best = cand
    return best


def mlp_forward(x, h, w, params, *, block_b=None, vmem_budget_bytes=24 << 20):
    """JAX/Pallas equivalent of Mlp.forward(x, h, w) (inference, drop=0)."""
    b, n_tok, c_in = x.shape
    assert n_tok == h * w, "expects N == h*w"
    hid = params["w1"].shape[1]
    c_out = params["w2"].shape[1]

    if block_b is None:
        block_b = _pick_block_b(b, n_tok, c_in, hid, c_out, vmem_budget_bytes)
    assert b % block_b == 0
    m = block_b * n_tok

    # Precompute the 9 per-token boundary masks (same pattern for every batch
    # element) so the kernel needs no halo padding and no integer div/mod.
    p = jnp.arange(n_tok, dtype=jnp.int32)
    i_idx, j_idx = p // w, p % w
    taps = []
    for dy in (-1, 0, 1):
        for dx in (-1, 0, 1):
            ok = ((i_idx + dy >= 0) & (i_idx + dy < h)
                  & (j_idx + dx >= 0) & (j_idx + dx < w))
            taps.append(ok)
    tap_mask = jnp.stack(taps, axis=-1).astype(x.dtype)     # (n_tok, 9)
    tap_mask = jnp.tile(tap_mask, (block_b, 1))             # (block_b*n_tok, 9)

    vmem_limit = int(min(48 << 20,
                         max(16 << 20,
                             2 * _vmem_bytes(block_b, n_tok, c_in, hid, c_out))))

    kern = functools.partial(_mlp_kernel, w=w)
    # NOTE: the parameter / mask blocks have constant index_maps so their DMAs are
    # reused across grid steps; they are tiny relative to the VMEM budget used to
    # size block_b, so default (double) buffering is kept for portability.
    return pl.pallas_call(
        kern,
        out_shape=jax.ShapeDtypeStruct((b, n_tok, c_out), x.dtype),
        grid=(b // block_b,),
        in_specs=[
            pl.BlockSpec((block_b, n_tok, c_in), lambda i: (i, 0, 0)),
            pl.BlockSpec((m, 9), lambda i: (0, 0)),
            pl.BlockSpec((c_in, hid), lambda i: (0, 0)),
            pl.BlockSpec((1, hid), lambda i: (0, 0)),
            pl.BlockSpec((9, hid), lambda i: (0, 0)),
            pl.BlockSpec((1, hid), lambda i: (0, 0)),
            pl.BlockSpec((hid, c_out), lambda i: (0, 0)),
            pl.BlockSpec((1, c_out), lambda i: (0, 0)),
        ],
        out_specs=pl.BlockSpec((block_b, n_tok, c_out), lambda i: (i, 0, 0)),
        compiler_params=pltpu.CompilerParams(
            dimension_semantics=("parallel",),
            vmem_limit_bytes=vmem_limit),
    )(x, tap_mask, params["w1"], params["b1"], params["w_dw"], params["b_dw"],
      params["w2"], params["b2"])


def _reference_forward(x, h, w, params):
    """Pure-JAX reference mirroring the torch module (eval, drop=0)."""
    b, n_tok, _ = x.shape
    hid = params["w1"].shape[1]

    h1 = x @ params["w1"] + params["b1"]                       # (b, N, hid)
    img = jnp.transpose(h1, (0, 2, 1)).reshape(b, hid, h, w)   # transpose(1,2).view
    y = jax.lax.conv_general_dilated(
        img, params["w_dw_oihw"], window_strides=(1, 1),
        padding=[(1, 1), (1, 1)],
        dimension_numbers=("NCHW", "OIHW", "NCHW"),
        feature_group_count=hid)
    y = y + params["b_dw"][0][None, :, None, None]
    y = jnp.transpose(y.reshape(b, hid, n_tok), (0, 2, 1))     # flatten(2).transpose
    y = _gelu_tanh(y)
    return y @ params["w2"] + params["b2"]


def _init_params(key, c_in, hidden, c_out):
    """Deterministic parameters in kernel-friendly layouts (+ OIHW copy for the ref)."""
    ks = jax.random.split(key, 6)
    w1 = 0.02 * jax.random.normal(ks[0], (c_in, hidden), jnp.float32)
    b1 = 0.02 * jax.random.normal(ks[1], (1, hidden), jnp.float32)
    w_dw_oihw = 0.3 * jax.random.normal(ks[2], (hidden, 1, 3, 3), jnp.float32)
    b_dw = 0.02 * jax.random.normal(ks[3], (1, hidden), jnp.float32)
    w2 = 0.02 * jax.random.normal(ks[4], (hidden, c_out), jnp.float32)
    b2 = 0.02 * jax.random.normal(ks[5], (1, c_out), jnp.float32)

    # (hidden, 1, 3, 3) -> (3, 3, hidden) -> (9, hidden), row index = (dy+1)*3 + (dx+1)
    w_dw = jnp.transpose(w_dw_oihw[:, 0], (1, 2, 0)).reshape(9, hidden)

    return {
        "w1": w1, "b1": b1,
        "w_dw": w_dw, "b_dw": b_dw, "w_dw_oihw": w_dw_oihw,
        "w2": w2, "b2": b2,
    }


if __name__ == "__main__":
    key = jax.random.PRNGKey(0)
    b, h, w = 2, 8, 8
    c_in, hidden, c_out = 128, 256, 128   # lane/MXU-friendly small shapes
    n_tok = h * w

    kx, kp = jax.random.split(key)
    x = jax.random.normal(kx, (b, n_tok, c_in), jnp.float32)
    params = _init_params(kp, c_in, hidden, c_out)

    out = mlp_forward(x, h, w, params)
    out = jax.block_until_ready(out)

    ref = _reference_forward(x, h, w, params)
    assert out.shape == (b, n_tok, c_out)
    assert jnp.allclose(out, ref, atol=5e-3, rtol=5e-3), float(
        jnp.max(jnp.abs(out - ref)))

    print("KERNEL_OK")
</pallas_src>

<mosaic_0001>
module attributes {stable_mosaic.version = 11 : i64} {
  func.func @_mlp_kernel(%arg0: i32, %arg1: memref<1x64x128xf32, #tpu.memory_space<vmem>>, %arg2: memref<64x9xf32, #tpu.memory_space<vmem>>, %arg3: memref<128x256xf32, #tpu.memory_space<vmem>>, %arg4: memref<1x256xf32, #tpu.memory_space<vmem>>, %arg5: memref<9x256xf32, #tpu.memory_space<vmem>>, %arg6: memref<1x256xf32, #tpu.memory_space<vmem>>, %arg7: memref<256x128xf32, #tpu.memory_space<vmem>>, %arg8: memref<1x128xf32, #tpu.memory_space<vmem>>, %arg9: memref<1x64x128xf32, #tpu.memory_space<vmem>>) attributes {dimension_semantics = [#tpu.dimension_semantics<parallel>], iteration_bounds = array<i64: 2>, scalar_prefetch = 0 : i64, scratch_operands = 0 : i64, tpu.core_type = #tpu.core_type<tc>, window_params = [{transform_indices = @transform_0, window_bounds = array<i64: 1, 64, 128>}, {pipeline_mode = #tpu.pipeline_mode<synchronous>, transform_indices = @transform_1, window_bounds = array<i64: 64, 9>}, {pipeline_mode = #tpu.pipeline_mode<synchronous>, transform_indices = @transform_2, window_bounds = array<i64: 128, 256>}, {pipeline_mode = #tpu.pipeline_mode<synchronous>, transform_indices = @transform_3, window_bounds = array<i64: 1, 256>}, {pipeline_mode = #tpu.pipeline_mode<synchronous>, transform_indices = @transform_4, window_bounds = array<i64: 9, 256>}, {pipeline_mode = #tpu.pipeline_mode<synchronous>, transform_indices = @transform_5, window_bounds = array<i64: 1, 256>}, {pipeline_mode = #tpu.pipeline_mode<synchronous>, transform_indices = @transform_6, window_bounds = array<i64: 256, 128>}, {pipeline_mode = #tpu.pipeline_mode<synchronous>, transform_indices = @transform_7, window_bounds = array<i64: 1, 128>}, {transform_indices = @transform_8, window_bounds = array<i64: 1, 64, 128>}]} {
    %c0 = arith.constant 0 : index
    %c0_0 = arith.constant 0 : index
    %c0_1 = arith.constant 0 : index
    %0 = vector.load %arg1[%c0, %c0_0, %c0_1] : memref<1x64x128xf32, #tpu.memory_space<vmem>>, vector<1x64x128xf32>
    %1 = vector.shape_cast %0 : vector<1x64x128xf32> to vector<64x128xf32>
    %2 = arith.truncf %1 : vector<64x128xf32> to vector<64x128xbf16>
    %c0_2 = arith.constant 0 : index
    %c0_3 = arith.constant 0 : index
    %3 = vector.load %arg3[%c0_2, %c0_3] : memref<128x256xf32, #tpu.memory_space<vmem>>, vector<128x256xf32>
    %4 = arith.truncf %3 : vector<128x256xf32> to vector<128x256xbf16>
    %cst = arith.constant dense<0.000000e+00> : vector<64x256xf32>
    %5 = tpu.matmul %2, %4, %cst {dimension_numbers = #tpu.dot_dimension_numbers<[1], [0], [0], [1], [0, 0, 1, 1], [], []>} : vector<64x128xbf16>, vector<128x256xbf16>, vector<64x256xf32> -> vector<64x256xf32>
    %c0_4 = arith.constant 0 : index
    %c0_5 = arith.constant 0 : index
    %6 = vector.load %arg4[%c0_4, %c0_5] : memref<1x256xf32, #tpu.memory_space<vmem>>, vector<1x256xf32>
    %7 = vector.broadcast %6 : vector<1x256xf32> to vector<64x256xf32>
    %8 = arith.addf %5, %7 : vector<64x256xf32>
    %c4 = arith.constant 4 : index
    %c0_6 = arith.constant 0 : index
    %9 = vector.load %arg5[%c4, %c0_6] : memref<9x256xf32, #tpu.memory_space<vmem>>, vector<1x256xf32>
    %10 = vector.broadcast %9 : vector<1x256xf32> to vector<64x256xf32>
    %11 = arith.mulf %8, %10 : vector<64x256xf32>
    %c9_i32 = arith.constant 9 : i32
    %12 = tpu.dynamic_rotate %8 by %c9_i32 dim 0 : vector<64x256xf32>, i32 -> vector<64x256xf32>
    %c0_7 = arith.constant 0 : index
    %c0_8 = arith.constant 0 : index
    %13 = vector.load %arg2[%c0_7, %c0_8] : memref<64x9xf32, #tpu.memory_space<vmem>>, vector<64x1xf32>
    %14 = vector.broadcast %13 : vector<64x1xf32> to vector<64x256xf32>
    %15 = arith.mulf %12, %14 : vector<64x256xf32>
    %c0_9 = arith.constant 0 : index
    %c0_10 = arith.constant 0 : index
    %16 = vector.load %arg5[%c0_9, %c0_10] : memref<9x256xf32, #tpu.memory_space<vmem>>, vector<1x256xf32>
    %17 = vector.broadcast %16 : vector<1x256xf32> to vector<64x256xf32>
    %18 = arith.mulf %15, %17 : vector<64x256xf32>
    %19 = arith.addf %11, %18 : vector<64x256xf32>
    %c8_i32 = arith.constant 8 : i32
    %20 = tpu.dynamic_rotate %8 by %c8_i32 dim 0 : vector<64x256xf32>, i32 -> vector<64x256xf32>
    %c0_11 = arith.constant 0 : index
    %c1 = arith.constant 1 : index
    %21 = vector.load %arg2[%c0_11, %c1] : memref<64x9xf32, #tpu.memory_space<vmem>>, vector<64x1xf32>
    %22 = vector.broadcast %21 : vector<64x1xf32> to vector<64x256xf32>
    %23 = arith.mulf %20, %22 : vector<64x256xf32>
    %c1_12 = arith.constant 1 : index
    %c0_13 = arith.constant 0 : index
    %24 = vector.load %arg5[%c1_12, %c0_13] : memref<9x256xf32, #tpu.memory_space<vmem>>, vector<1x256xf32>
    %25 = vector.broadcast %24 : vector<1x256xf32> to vector<64x256xf32>
    %26 = arith.mulf %23, %25 : vector<64x256xf32>
    %27 = arith.addf %19, %26 : vector<64x256xf32>
    %c7_i32 = arith.constant 7 : i32
    %28 = tpu.dynamic_rotate %8 by %c7_i32 dim 0 : vector<64x256xf32>, i32 -> vector<64x256xf32>
    %c0_14 = arith.constant 0 : index
    %c2 = arith.constant 2 : index
    %29 = vector.load %arg2[%c0_14, %c2] : memref<64x9xf32, #tpu.memory_space<vmem>>, vector<64x1xf32>
    %30 = vector.broadcast %29 : vector<64x1xf32> to vector<64x256xf32>
    %31 = arith.mulf %28, %30 : vector<64x256xf32>
    %c2_15 = arith.constant 2 : index
    %c0_16 = arith.constant 0 : index
    %32 = vector.load %arg5[%c2_15, %c0_16] : memref<9x256xf32, #tpu.memory_space<vmem>>, vector<1x256xf32>
    %33 = vector.broadcast %32 : vector<1x256xf32> to vector<64x256xf32>
    %34 = arith.mulf %31, %33 : vector<64x256xf32>
    %35 = arith.addf %27, %34 : vector<64x256xf32>
    %c1_i32 = arith.constant 1 : i32
    %36 = tpu.dynamic_rotate %8 by %c1_i32 dim 0 : vector<64x256xf32>, i32 -> vector<64x256xf32>
    %c0_17 = arith.constant 0 : index
    %c3 = arith.constant 3 : index
    %37 = vector.load %arg2[%c0_17, %c3] : memref<64x9xf32, #tpu.memory_space<vmem>>, vector<64x1xf32>
    %38 = vector.broadcast %37 : vector<64x1xf32> to vector<64x256xf32>
    %39 = arith.mulf %36, %38 : vector<64x256xf32>
    %c3_18 = arith.constant 3 : index
    %c0_19 = arith.constant 0 : index
    %40 = vector.load %arg5[%c3_18, %c0_19] : memref<9x256xf32, #tpu.memory_space<vmem>>, vector<1x256xf32>
    %41 = vector.broadcast %40 : vector<1x256xf32> to vector<64x256xf32>
    %42 = arith.mulf %39, %41 : vector<64x256xf32>
    %43 = arith.addf %35, %42 : vector<64x256xf32>
    %c63_i32 = arith.constant 63 : i32
    %44 = tpu.dynamic_rotate %8 by %c63_i32 dim 0 : vector<64x256xf32>, i32 -> vector<64x256xf32>
    %c0_20 = arith.constant 0 : index
    %c5 = arith.constant 5 : index
    %45 = vector.load %arg2[%c0_20, %c5] : memref<64x9xf32, #tpu.memory_space<vmem>>, vector<64x1xf32>
    %46 = vector.broadcast %45 : vector<64x1xf32> to vector<64x256xf32>
    %47 = arith.mulf %44, %46 : vector<64x256xf32>
    %c5_21 = arith.constant 5 : index
    %c0_22 = arith.constant 0 : index
    %48 = vector.load %arg5[%c5_21, %c0_22] : memref<9x256xf32, #tpu.memory_space<vmem>>, vector<1x256xf32>
    %49 = vector.broadcast %48 : vector<1x256xf32> to vector<64x256xf32>
    %50 = arith.mulf %47, %49 : vector<64x256xf32>
    %51 = arith.addf %43, %50 : vector<64x256xf32>
    %c57_i32 = arith.constant 57 : i32
    %52 = tpu.dynamic_rotate %8 by %c57_i32 dim 0 : vector<64x256xf32>, i32 -> vector<64x256xf32>
    %c0_23 = arith.constant 0 : index
    %c6 = arith.constant 6 : index
    %53 = vector.load %arg2[%c0_23, %c6] : memref<64x9xf32, #tpu.memory_space<vmem>>, vector<64x1xf32>
    %54 = vector.broadcast %53 : vector<64x1xf32> to vector<64x256xf32>
    %55 = arith.mulf %52, %54 : vector<64x256xf32>
    %c6_24 = arith.constant 6 : index
    %c0_25 = arith.constant 0 : index
    %56 = vector.load %arg5[%c6_24, %c0_25] : memref<9x256xf32, #tpu.memory_space<vmem>>, vector<1x256xf32>
    %57 = vector.broadcast %56 : vector<1x256xf32> to vector<64x256xf32>
    %58 = arith.mulf %55, %57 : vector<64x256xf32>
    %59 = arith.addf %51, %58 : vector<64x256xf32>
    %c56_i32 = arith.constant 56 : i32
    %60 = tpu.dynamic_rotate %8 by %c56_i32 dim 0 : vector<64x256xf32>, i32 -> vector<64x256xf32>
    %c0_26 = arith.constant 0 : index
    %c7 = arith.constant 7 : index
    %61 = vector.load %arg2[%c0_26, %c7] : memref<64x9xf32, #tpu.memory_space<vmem>>, vector<64x1xf32>
    %62 = vector.broadcast %61 : vector<64x1xf32> to vector<64x256xf32>
    %63 = arith.mulf %60, %62 : vector<64x256xf32>
    %c7_27 = arith.constant 7 : index
    %c0_28 = arith.constant 0 : index
    %64 = vector.load %arg5[%c7_27, %c0_28] : memref<9x256xf32, #tpu.memory_space<vmem>>, vector<1x256xf32>
    %65 = vector.broadcast %64 : vector<1x256xf32> to vector<64x256xf32>
    %66 = arith.mulf %63, %65 : vector<64x256xf32>
    %67 = arith.addf %59, %66 : vector<64x256xf32>
    %c55_i32 = arith.constant 55 : i32
    %68 = tpu.dynamic_rotate %8 by %c55_i32 dim 0 : vector<64x256xf32>, i32 -> vector<64x256xf32>
    %c0_29 = arith.constant 0 : index
    %c8 = arith.constant 8 : index
    %69 = vector.load %arg2[%c0_29, %c8] : memref<64x9xf32, #tpu.memory_space<vmem>>, vector<64x1xf32>
    %70 = vector.broadcast %69 : vector<64x1xf32> to vector<64x256xf32>
    %71 = arith.mulf %68, %70 : vector<64x256xf32>
    %c8_30 = arith.constant 8 : index
    %c0_31 = arith.constant 0 : index
    %72 = vector.load %arg5[%c8_30, %c0_31] : memref<9x256xf32, #tpu.memory_space<vmem>>, vector<1x256xf32>
    %73 = vector.broadcast %72 : vector<1x256xf32> to vector<64x256xf32>
    %74 = arith.mulf %71, %73 : vector<64x256xf32>
    %75 = arith.addf %67, %74 : vector<64x256xf32>
    %c0_32 = arith.constant 0 : index
    %c0_33 = arith.constant 0 : index
    %76 = vector.load %arg6[%c0_32, %c0_33] : memref<1x256xf32, #tpu.memory_space<vmem>>, vector<1x256xf32>
    %77 = vector.broadcast %76 : vector<1x256xf32> to vector<64x256xf32>
    %78 = arith.addf %75, %77 : vector<64x256xf32>
    %cst_34 = arith.constant 5.000000e-01 : f32
    %79 = vector.broadcast %cst_34 : f32 to vector<64x256xf32>
    %80 = arith.mulf %79, %78 : vector<64x256xf32>
    %cst_35 = arith.constant 4.471500e-02 : f32
    %81 = vector.broadcast %cst_35 : f32 to vector<64x256xf32>
    %82 = arith.mulf %81, %78 : vector<64x256xf32>
    %83 = arith.mulf %82, %78 : vector<64x256xf32>
    %84 = arith.mulf %83, %78 : vector<64x256xf32>
    %85 = arith.addf %78, %84 : vector<64x256xf32>
    %cst_36 = arith.constant 0.797884583 : f32
    %86 = vector.broadcast %cst_36 : f32 to vector<64x256xf32>
    %87 = arith.mulf %86, %85 : vector<64x256xf32>
    %88 = math.tanh %87 : vector<64x256xf32>
    %cst_37 = arith.constant 1.000000e+00 : f32
    %89 = vector.broadcast %cst_37 : f32 to vector<64x256xf32>
    %90 = arith.addf %89, %88 : vector<64x256xf32>
    %91 = arith.mulf %80, %90 : vector<64x256xf32>
    %92 = arith.truncf %91 : vector<64x256xf32> to vector<64x256xbf16>
    %c0_38 = arith.constant 0 : index
    %c0_39 = arith.constant 0 : index
    %93 = vector.load %arg7[%c0_38, %c0_39] : memref<256x128xf32, #tpu.memory_space<vmem>>, vector<256x128xf32>
    %94 = arith.truncf %93 : vector<256x128xf32> to vector<256x128xbf16>
    %cst_40 = arith.constant dense<0.000000e+00> : vector<64x128xf32>
    %95 = tpu.matmul %92, %94, %cst_40 {dimension_numbers = #tpu.dot_dimension_numbers<[1], [0], [0], [1], [0, 0, 1, 1], [], []>} : vector<64x256xbf16>, vector<256x128xbf16>, vector<64x128xf32> -> vector<64x128xf32>
    %c0_41 = arith.constant 0 : index
    %c0_42 = arith.constant 0 : index
    %96 = vector.load %arg8[%c0_41, %c0_42] : memref<1x128xf32, #tpu.memory_space<vmem>>, vector<1x128xf32>
    %97 = vector.broadcast %96 : vector<1x128xf32> to vector<64x128xf32>
    %98 = arith.addf %95, %97 : vector<64x128xf32>
    %99 = vector.shape_cast %98 : vector<64x128xf32> to vector<1x64x128xf32>
    %c0_43 = arith.constant 0 : index
    %c0_44 = arith.constant 0 : index
    %c0_45 = arith.constant 0 : index
    %100 = vector.load %arg9[%c0_43, %c0_44, %c0_45] : memref<1x64x128xf32, #tpu.memory_space<vmem>>, vector<1x64x128xf32>
    tpu.vector_store %arg9[%c0_43, %c0_44, %c0_45], %99 {strides = array<i32>} : memref<1x64x128xf32, #tpu.memory_space<vmem>>, vector<1x64x128xf32>,
    return
  }
  func.func @transform_0(%arg0: i32) -> (i32, i32, i32) {
    %c0_i32 = arith.constant 0 : i32
    %c0_i32_0 = arith.constant 0 : i32
    %c0_i32_1 = arith.constant 0 : i32
    return %arg0, %c0_i32, %c0_i32_0 : i32, i32, i32
  }
  func.func @transform_1(%arg0: i32) -> (i32, i32) {
    %c0_i32 = arith.constant 0 : i32
    %c0_i32_0 = arith.constant 0 : i32
    %c0_i32_1 = arith.constant 0 : i32
    return %c0_i32, %c0_i32_0 : i32, i32
  }
  func.func @transform_2(%arg0: i32) -> (i32, i32) {
    %c0_i32 = arith.constant 0 : i32
    %c0_i32_0 = arith.constant 0 : i32
    %c0_i32_1 = arith.constant 0 : i32
    return %c0_i32, %c0_i32_0 : i32, i32
  }
  func.func @transform_3(%arg0: i32) -> (i32, i32) {
    %c0_i32 = arith.constant 0 : i32
    %c0_i32_0 = arith.constant 0 : i32
    %c0_i32_1 = arith.constant 0 : i32
    return %c0_i32, %c0_i32_0 : i32, i32
  }
  func.func @transform_4(%arg0: i32) -> (i32, i32) {
    %c0_i32 = arith.constant 0 : i32
    %c0_i32_0 = arith.constant 0 : i32
    %c0_i32_1 = arith.constant 0 : i32
    return %c0_i32, %c0_i32_0 : i32, i32
  }
  func.func @transform_5(%arg0: i32) -> (i32, i32) {
    %c0_i32 = arith.constant 0 : i32
    %c0_i32_0 = arith.constant 0 : i32
    %c0_i32_1 = arith.constant 0 : i32
    return %c0_i32, %c0_i32_0 : i32, i32
  }
  func.func @transform_6(%arg0: i32) -> (i32, i32) {
    %c0_i32 = arith.constant 0 : i32
    %c0_i32_0 = arith.constant 0 : i32
    %c0_i32_1 = arith.constant 0 : i32
    return %c0_i32, %c0_i32_0 : i32, i32
  }
  func.func @transform_7(%arg0: i32) -> (i32, i32) {
    %c0_i32 = arith.constant 0 : i32
    %c0_i32_0 = arith.constant 0 : i32
    %c0_i32_1 = arith.constant 0 : i32
    return %c0_i32, %c0_i32_0 : i32, i32
  }
  func.func @transform_8(%arg0: i32) -> (i32, i32, i32) {
    %c0_i32 = arith.constant 0 : i32
    %c0_i32_0 = arith.constant 0 : i32
    %c0_i32_1 = arith.constant 0 : i32
    return %arg0, %c0_i32, %c0_i32_0 : i32, i32, i32
  }
}

</mosaic_0001>

<llo_original>
// kernel: tpu_custom_call.1
$region0: #{tpu_custom_call.1}
  #allocation0 [shape = 'u32[]', space=smem, size = 0x4, offset = 0x4, fixed_abs, tag = 'smem constant byte address 0x4 - core index']
  #allocation1 [shape = 'u32[144,128]{1,0:T(1,128)}', space=vmem, size = 0x12000, scoped, tag = 'internal scratch']
  %s0 = inlined_call_operand.hbm [shape: f32[2,64,128], index: 0, kind: input, shape index: {}]
  %s1 = inlined_call_operand.vmem [shape: f32[64,9], index: 1, kind: input, shape index: {}]
  %s2 = inlined_call_operand.hbm [shape: f32[128,256], index: 2, kind: input, shape index: {}]
  %s3 = inlined_call_operand.vmem [shape: f32[1,256], index: 3, kind: input, shape index: {}]
  %s4 = inlined_call_operand.vmem [shape: f32[9,256], index: 4, kind: input, shape index: {}]
  %s5 = inlined_call_operand.vmem [shape: f32[1,256], index: 5, kind: input, shape index: {}]
  %s6 = inlined_call_operand.hbm [shape: f32[256,128], index: 6, kind: input, shape index: {}]
  %s7 = inlined_call_operand.vmem [shape: f32[1,128], index: 7, kind: input, shape index: {}]
  %s8 = inlined_call_operand.hbm [shape: f32[2,64,128], index: 8, kind: output, shape index: {}]
  %s9 = sld [smem:[#allocation0]]
  $region77: #{tpu_custom_call.1} parent=0
    _
  %s11 = ssub.s32 1, %s9
  %s12 = scalar_select 0, %s11, %s9
  $region1: #{tpu_custom_call.1} parent=0
    #allocation2 [shape = 'u8[65536]{0}', space=vmem, size = 0x10000, scoped, tag = 'input window, operand 0']
    #allocation3 [shape = 's32[2]{0}', space=sflag, size = 0x8, scoped, tag = 'scoped memory for tpu_custom_call.1']
    #allocation4 [shape = 's32[2]{0}', space=sflag, size = 0x8, scoped, tag = 'scoped memory for tpu_custom_call.1']
    #allocation5 [shape = 'u8[131072]{0}', space=vmem, size = 0x20000, scoped, tag = 'input window, operand 2, single buffered']
    #allocation6 [shape = 's32[1]{0}', space=sflag, size = 0x4, scoped, tag = 'scoped memory for tpu_custom_call.1']
    #allocation7 [shape = 'u8[131072]{0}', space=vmem, size = 0x20000, scoped, tag = 'input window, operand 6, single buffered']
    #allocation8 [shape = 'u8[65536]{0}', space=vmem, size = 0x10000, scoped, tag = 'output window, operand 0']
    %13 = vsyncpa [#allocation3], 0
    %s14 = scalar_lea.sflag [#allocation3], 1
    %15 = vsyncpa %s14, 0
    %16 = vsyncpa [#allocation6], 0
    %17 = vsyncpa [#allocation4], 0
    %s18 = scalar_lea.sflag [#allocation4], 1
    %19 = vsyncpa %s18, 0
    loop: start=0, step=1, limit=4
    $region2: #{tpu_custom_call.1} parent=1 // loop_pre_header
      _
    $region3: #{tpu_custom_call.1} parent=1 // loop_header
      %s21 = sphi 0, %s25
      %p22 = scmp.ge.s32.totalorder %s21, 4
      %s31 = sphi 0, %s33
      %s34 = sphi 0, %s31
      %s35 = sphi 0, %s34
      %s51 = sphi 0, %s35
      %s55 = sphi 0, %s55
      %s57 = sphi 0, %s55
      %s58 = sphi 0, %s57
      %s72 = sphi 0, %s58
      %s76 = sphi 0, %s76
      %s78 = sphi 0, %s76
      %s79 = sphi 0, %s78
      %s93 = sphi 0, %s79
      %s97 = sphi 0, %s97
      %s99 = sphi 0, %s97
      %s100 = sphi 0, %s99
      %s114 = sphi 0, %s100
      %s118 = sphi 0, %s118
      %s120 = sphi 0, %s118
      %s121 = sphi 0, %s120
      %s135 = sphi 0, %s121
      %s139 = sphi 0, %s139
      %s141 = sphi 0, %s139
      %s142 = sphi 0, %s141
      %s156 = sphi 0, %s142
      %s160 = sphi 0, %s160
      %s162 = sphi 0, %s160
      %s163 = sphi 0, %s162
      %s177 = sphi 0, %s163
      %s181 = sphi 0, %s181
      %s183 = sphi 0, %s181
      %s184 = sphi 0, %s183
      %s198 = sphi 0, %s184
      %s204 = sphi 0, %s206
      %s207 = sphi 0, %s204
      %s208 = sphi 0, %s207
      %s224 = sphi 0, %s208
    $region4: #{tpu_custom_call.1} parent=1 // loop_header_branch
      %24 = sbr.rel (%p22) target = $region8
    $region5: #{tpu_custom_call.1} parent=1 // loop_body
      %s26 = ssub.s32 %s21, 1
      %s27 = ssub.s32 %s21, 2
      %s28 = sadd.s32 %s21, 1
      %s29 = ssub.s32 %s21, %s28
      %p30 = scmp.eq.s32.totalorder %s29, 0
      %s32 = sadd.s32 %s31, 1
      %s33 = scalar_select %p30, %s31, %s32
      %p36 = pneg %p30
      %p37 = scmp.eq.s32.totalorder %s21, 1
      %p38 = por %p36, %p37
      %p39 = scmp.ne.s32.totalorder %s31, %s34
      %p40 = scmp.eq.s32.totalorder %s21, 0
      %p41 = por %p39, %p40
      %p42 = scmp.ne.s32.totalorder %s31, %s34
      %p43 = scmp.eq.s32.totalorder %s26, 1
      %p44 = por %p42, %p43
      %p45 = scmp.ne.s32.totalorder %s34, %s35
      %p46 = scmp.eq.s32.totalorder %s26, 0
      %p47 = por %p45, %p46
      %p48 = scmp.ne.s32.totalorder %s34, %s35
      %p49 = scmp.eq.s32.totalorder %s27, 1
      %p50 = por %p48, %p49
      %p52 = scmp.ne.s32.totalorder %s35, %s51
      %p53 = scmp.eq.s32.totalorder %s27, 0
      %p54 = por %p52, %p53
      %s56 = sadd.s32 %s55, 1
      %p59 = scmp.eq.s32.totalorder %s21, 1
      %p60 = scmp.ne.s32.totalorder %s55, %s57
      %p61 = scmp.eq.s32.totalorder %s21, 0
      %p62 = por %p60, %p61
      %p63 = scmp.ne.s32.totalorder %s55, %s57
      %p64 = scmp.eq.s32.totalorder %s26, 1
      %p65 = por %p63, %p64
      %p66 = scmp.ne.s32.totalorder %s57, %s58
      %p67 = scmp.eq.s32.totalorder %s26, 0
      %p68 = por %p66, %p67
      %p69 = scmp.ne.s32.totalorder %s57, %s58
      %p70 = scmp.eq.s32.totalorder %s27, 1
      %p71 = por %p69, %p70
      %p73 = scmp.ne.s32.totalorder %s58, %s72
      %p74 = scmp.eq.s32.totalorder %s27, 0
      %p75 = por %p73, %p74
      %s77 = sadd.s32 %s76, 1
      %p80 = scmp.eq.s32.totalorder %s21, 1
      %p81 = scmp.ne.s32.totalorder %s76, %s78
      %p82 = scmp.eq.s32.totalorder %s21, 0
      %p83 = por %p81, %p82
      %p84 = scmp.ne.s32.totalorder %s76, %s78
      %p85 = scmp.eq.s32.totalorder %s26, 1
      %p86 = por %p84, %p85
      %p87 = scmp.ne.s32.totalorder %s78, %s79
      %p88 = scmp.eq.s32.totalorder %s26, 0
      %p89 = por %p87, %p88
      %p90 = scmp.ne.s32.totalorder %s78, %s79
      %p91 = scmp.eq.s32.totalorder %s27, 1
      %p92 = por %p90, %p91
      %p94 = scmp.ne.s32.totalorder %s79, %s93
      %p95 = scmp.eq.s32.totalorder %s27, 0
      %p96 = por %p94, %p95
      %s98 = sadd.s32 %s97, 1
      %p101 = scmp.eq.s32.totalorder %s21, 1
      %p102 = scmp.ne.s32.totalorder %s97, %s99
      %p103 = scmp.eq.s32.totalorder %s21, 0
      %p104 = por %p102, %p103
      %p105 = scmp.ne.s32.totalorder %s97, %s99
      %p106 = scmp.eq.s32.totalorder %s26, 1
      %p107 = por %p105, %p106
      %p108 = scmp.ne.s32.totalorder %s99, %s100
      %p109 = scmp.eq.s32.totalorder %s26, 0
      %p110 = por %p108, %p109
      %p111 = scmp.ne.s32.totalorder %s99, %s100
      %p112 = scmp.eq.s32.totalorder %s27, 1
      %p113 = por %p111, %p112
      %p115 = scmp.ne.s32.totalorder %s100, %s114
      %p116 = scmp.eq.s32.totalorder %s27, 0
      %p117 = por %p115, %p116
      %s119 = sadd.s32 %s118, 1
      %p122 = scmp.eq.s32.totalorder %s21, 1
      %p123 = scmp.ne.s32.totalorder %s118, %s120
      %p124 = scmp.eq.s32.totalorder %s21, 0
      %p125 = por %p123, %p124
      %p126 = scmp.ne.s32.totalorder %s118, %s120
      %p127 = scmp.eq.s32.totalorder %s26, 1
      %p128 = por %p126, %p127
      %p129 = scmp.ne.s32.totalorder %s120, %s121
      %p130 = scmp.eq.s32.totalorder %s26, 0
      %p131 = por %p129, %p130
      %p132 = scmp.ne.s32.totalorder %s120, %s121
      %p133 = scmp.eq.s32.totalorder %s27, 1
      %p134 = por %p132, %p133
      %p136 = scmp.ne.s32.totalorder %s121, %s135
      %p137 = scmp.eq.s32.totalorder %s27, 0
      %p138 = por %p136, %p137
      %s140 = sadd.s32 %s139, 1
      %p143 = scmp.eq.s32.totalorder %s21, 1
      %p144 = scmp.ne.s32.totalorder %s139, %s141
      %p145 = scmp.eq.s32.totalorder %s21, 0
      %p146 = por %p144, %p145
      %p147 = scmp.ne.s32.totalorder %s139, %s141
      %p148 = scmp.eq.s32.totalorder %s26, 1
      %p149 = por %p147, %p148
      %p150 = scmp.ne.s32.totalorder %s141, %s142
      %p151 = scmp.eq.s32.totalorder %s26, 0
      %p152 = por %p150, %p151
      %p153 = scmp.ne.s32.totalorder %s141, %s142
      %p154 = scmp.eq.s32.totalorder %s27, 1
      %p155 = por %p153, %p154
      %p157 = scmp.ne.s32.totalorder %s142, %s156
      %p158 = scmp.eq.s32.totalorder %s27, 0
      %p159 = por %p157, %p158
      %s161 = sadd.s32 %s160, 1
      %p164 = scmp.eq.s32.totalorder %s21, 1
      %p165 = scmp.ne.s32.totalorder %s160, %s162
      %p166 = scmp.eq.s32.totalorder %s21, 0
      %p167 = por %p165, %p166
      %p168 = scmp.ne.s32.totalorder %s160, %s162
      %p169 = scmp.eq.s32.totalorder %s26, 1
      %p170 = por %p168, %p169
      %p171 = scmp.ne.s32.totalorder %s162, %s163
      %p172 = scmp.eq.s32.totalorder %s26, 0
      %p173 = por %p171, %p172
      %p174 = scmp.ne.s32.totalorder %s162, %s163
      %p175 = scmp.eq.s32.totalorder %s27, 1
      %p176 = por %p174, %p175
      %p178 = scmp.ne.s32.totalorder %s163, %s177
      %p179 = scmp.eq.s32.totalorder %s27, 0
      %p180 = por %p178, %p179
      %s182 = sadd.s32 %s181, 1
      %p185 = scmp.eq.s32.totalorder %s21, 1
      %p186 = scmp.ne.s32.totalorder %s181, %s183
      %p187 = scmp.eq.s32.totalorder %s21, 0
      %p188 = por %p186, %p187
      %p189 = scmp.ne.s32.totalorder %s181, %s183
      %p190 = scmp.eq.s32.totalorder %s26, 1
      %p191 = por %p189, %p190
      %p192 = scmp.ne.s32.totalorder %s183, %s184
      %p193 = scmp.eq.s32.totalorder %s26, 0
      %p194 = por %p192, %p193
      %p195 = scmp.ne.s32.totalorder %s183, %s184
      %p196 = scmp.eq.s32.totalorder %s27, 1
      %p197 = por %p195, %p196
      %p199 = scmp.ne.s32.totalorder %s184, %s198
      %p200 = scmp.eq.s32.totalorder %s27, 0
      %p201 = por %p199, %p200
      %s202 = ssub.s32 %s21, %s28
      %p203 = scmp.eq.s32.totalorder %s202, 0
      %s205 = sadd.s32 %s204, 1
      %s206 = scalar_select %p203, %s204, %s205
      %p209 = pneg %p203
      %p210 = scmp.eq.s32.totalorder %s21, 1
      %p211 = por %p209, %p210
      %p212 = scmp.ne.s32.totalorder %s204, %s207
      %p213 = scmp.eq.s32.totalorder %s21, 0
      %p214 = por %p212, %p213
      %p215 = scmp.ne.s32.totalorder %s204, %s207
      %p216 = scmp.eq.s32.totalorder %s26, 1
      %p217 = por %p215, %p216
      %p218 = scmp.ne.s32.totalorder %s207, %s208
      %p219 = scmp.eq.s32.totalorder %s26, 0
      %p220 = por %p218, %p219
      %p221 = scmp.ne.s32.totalorder %s207, %s208
      %p222 = scmp.eq.s32.totalorder %s27, 1
      %p223 = por %p221, %p222
      %p225 = scmp.ne.s32.totalorder %s208, %s224
      %p226 = scmp.eq.s32.totalorder %s27, 0
      %p227 = por %p225, %p226
      %p228 = scmp.le.s32.totalorder 1, %s21
      %p229 = scmp.lt.s32.totalorder %s21, 3
      %p230 = pnand %p228, %p229
      %p231 = pneg %p230
      // Predicated region
      $region9: #{tpu_custom_call.1} parent=5 // pred_check
        _
      $region10: #{tpu_custom_call.1} parent=5 // pred_check_branch
        %233 = sbr.rel (%p230) target = $region12
      $region11: #{tpu_custom_call.1} parent=5 // pred_region
        %s234 = ssub.s32 %s21, 1
        // Predicated region
        $region13: #{tpu_custom_call.1} parent=11 // pred_check
          %p235 = pneg %p68
        $region14: #{tpu_custom_call.1} parent=11 // pred_check_branch
          %237 = sbr.rel (%p235) target = $region16
        $region15: #{tpu_custom_call.1} parent=11 // pred_region
          _
        $region16: #{tpu_custom_call.1} parent=11 // pred_fallthru
          _
        // Predicated region
        $region17: #{tpu_custom_call.1} parent=11 // pred_check
          %p238 = pneg %p89
        $region18: #{tpu_custom_call.1} parent=11 // pred_check_branch
          %240 = sbr.rel (%p238) target = $region20
        $region19: #{tpu_custom_call.1} parent=11 // pred_region
          %s242 = ssub.s32 4096, 4096
          %243 = vsyncadd [#allocation6], %s242
          %s244 = sshll.u32 [#allocation5], 4
          %s245 = int_to_ptr.vmem [resolvable:$true] %s244
          %250 = dma.hbm_to_vmem [thread:$0]  %s2, 4096, %s245, [#allocation6], 256, 256, 16
        $region20: #{tpu_custom_call.1} parent=11 // pred_fallthru
          _
        // Predicated region
        $region21: #{tpu_custom_call.1} parent=11 // pred_check
          %p251 = pneg %p110
        $region22: #{tpu_custom_call.1} parent=11 // pred_check_branch
          %253 = sbr.rel (%p251) target = $region24
        $region23: #{tpu_custom_call.1} parent=11 // pred_region
          _
        $region24: #{tpu_custom_call.1} parent=11 // pred_fallthru
          _
        // Predicated region
        $region25: #{tpu_custom_call.1} parent=11 // pred_check
          %p254 = pneg %p131
        $region26: #{tpu_custom_call.1} parent=11 // pred_check_branch
          %256 = sbr.rel (%p254) target = $region28
        $region27: #{tpu_custom_call.1} parent=11 // pred_region
          _
        $region28: #{tpu_custom_call.1} parent=11 // pred_fallthru
          _
        // Predicated region
        $region29: #{tpu_custom_call.1} parent=11 // pred_check
          %p257 = pneg %p152
        $region30: #{tpu_custom_call.1} parent=11 // pred_check_branch
          %259 = sbr.rel (%p257) target = $region32
        $region31: #{tpu_custom_call.1} parent=11 // pred_region
          _
        $region32: #{tpu_custom_call.1} parent=11 // pred_fallthru
          _
        // Predicated region
        $region33: #{tpu_custom_call.1} parent=11 // pred_check
          %p260 = pneg %p173
        $region34: #{tpu_custom_call.1} parent=11 // pred_check_branch
          %262 = sbr.rel (%p260) target = $region36
        $region35: #{tpu_custom_call.1} parent=11 // pred_region
          %s264 = ssub.s32 4096, 4096
          %265 = vsyncadd [#allocation6], %s264
          %s266 = sshll.u32 [#allocation7], 4
          %s267 = int_to_ptr.vmem [resolvable:$true] %s266
          %272 = dma.hbm_to_vmem [thread:$0]  %s6, 4096, %s267, [#allocation6], 128, 128, 8
        $region36: #{tpu_custom_call.1} parent=11 // pred_fallthru
          _
        // Predicated region
        $region37: #{tpu_custom_call.1} parent=11 // pred_check
          %p273 = pneg %p194
        $region38: #{tpu_custom_call.1} parent=11 // pred_check_branch
          %275 = sbr.rel (%p273) target = $region40
        $region39: #{tpu_custom_call.1} parent=11 // pred_region
          _
        $region40: #{tpu_custom_call.1} parent=11 // pred_fallthru
          _
      $region12: #{tpu_custom_call.1} parent=5 // pred_fallthru
        _
      %p276 = scmp.lt.s32.totalorder %s21, 2
      // Predicated region
      $region41: #{tpu_custom_call.1} parent=5 // pred_check
        %p277 = pneg %p276
      $region42: #{tpu_custom_call.1} parent=5 // pred_check_branch
        %279 = sbr.rel (%p277) target = $region44
      $region43: #{tpu_custom_call.1} parent=5 // pred_region
        // Predicated region
        $region45: #{tpu_custom_call.1} parent=43 // pred_check
          %p280 = pneg %p41
        $region46: #{tpu_custom_call.1} parent=43 // pred_check_branch
          %282 = sbr.rel (%p280) target = $region48
        $region47: #{tpu_custom_call.1} parent=43 // pred_region
          %s283 = sand.u32 %s31, 1
          %s284 = scalar_lea.sflag [#allocation3], %s283
          %s285 = sand.u32 %s31, 1
          %s286 = smul.addr %s285, 64
          %s287 = scalar_lea.vmem [#allocation2], %s286
          %s289 = ssub.s32 1024, 1024
          %290 = vsyncadd %s284, %s289
          %s291 = smul.addr %s21, 8
          %s292 = smul.addr %s291, 128
          %s293 = scalar_lea.hbm %s0, %s292
          %s294 = sshll.u32 %s287, 4
          %s295 = int_to_ptr.vmem [resolvable:$true] %s294
          %300 = dma.hbm_to_vmem [thread:$0]  %s293, 1024, %s295, %s284, 128, 128, 8
        $region48: #{tpu_custom_call.1} parent=43 // pred_fallthru
          _
      $region44: #{tpu_custom_call.1} parent=5 // pred_fallthru
        _
      %p301 = scmp.le.s32.totalorder 1, %s21
      %p302 = scmp.lt.s32.totalorder %s21, 3
      %p303 = pnand %p301, %p302
      %p304 = pneg %p303
      // Predicated region
      $region49: #{tpu_custom_call.1} parent=5 // pred_check
        _
      $region50: #{tpu_custom_call.1} parent=5 // pred_check_branch
        %306 = sbr.rel (%p303) target = $region52
      $region51: #{tpu_custom_call.1} parent=5 // pred_region
        %s307 = ssub.s32 %s21, 1
        %s308 = sand.u32 %s34, 1
        %s309 = scalar_lea.sflag [#allocation3], %s308
        %s310 = sand.u32 %s34, 1
        %s311 = smul.addr %s310, 64
        %s312 = scalar_lea.vmem [#allocation2], %s311
        // Predicated region
        $region53: #{tpu_custom_call.1} parent=51 // pred_check
          %p313 = pneg %p47
        $region54: #{tpu_custom_call.1} parent=51 // pred_check_branch
          %315 = sbr.rel (%p313) target = $region56
        $region55: #{tpu_custom_call.1} parent=51 // pred_region
          %316 = dma.done %s309, 1024
        $region56: #{tpu_custom_call.1} parent=51 // pred_fallthru
          _
        // Predicated region
        $region57: #{tpu_custom_call.1} parent=51 // pred_check
          %p317 = pneg %p89
        $region58: #{tpu_custom_call.1} parent=51 // pred_check_branch
          %319 = sbr.rel (%p317) target = $region60
        $region59: #{tpu_custom_call.1} parent=51 // pred_region
          %320 = dma.done [#allocation6], 4096
        $region60: #{tpu_custom_call.1} parent=51 // pred_fallthru
          _
        // Predicated region
        $region61: #{tpu_custom_call.1} parent=51 // pred_check
          %p321 = pneg %p173
        $region62: #{tpu_custom_call.1} parent=51 // pred_check_branch
          %323 = sbr.rel (%p321) target = $region64
        $region63: #{tpu_custom_call.1} parent=51 // pred_region
          %324 = dma.done [#allocation6], 4096
        $region64: #{tpu_custom_call.1} parent=51 // pred_fallthru
          _
        %s325 = sand.u32 %s34, 1
        %s326 = scalar_lea.sflag [#allocation3], %s325
        %s327 = sand.u32 %s34, 1
        %s328 = smul.addr %s327, 64
        %s329 = scalar_lea.vmem [#allocation2], %s328
        %p330 = pneg %p47
        %p331 = pneg %p44
        %p332 = pneg %p68
        %p333 = pneg %p65
        %p334 = pneg %p89
        %p335 = pneg %p86
        %p336 = pneg %p110
        %p337 = pneg %p107
        %p338 = pneg %p131
        %p339 = pneg %p128
        %p340 = pneg %p152
        %p341 = pneg %p149
        %p342 = pneg %p173
        %p343 = pneg %p170
        %p344 = pneg %p194
        %p345 = pneg %p191
        %p346 = pneg %p220
        %p347 = pneg %p217
        %s348 = sand.u32 %s207, 1
        %s349 = scalar_lea.sflag [#allocation4], %s348
        %s350 = sand.u32 %s207, 1
        %s351 = smul.addr %s350, 64
        %s352 = scalar_lea.vmem [#allocation8], %s351
        %v354 = vld [vmem:[%s312] sm:$0xff]
        %v355 = vld [vmem:[%s312 + $0x8] sm:$0xff]
        %v356 = vld [vmem:[%s312 + $0x10] sm:$0xff]
        %v357 = vld [vmem:[%s312 + $0x18] sm:$0xff]
        %v358 = vld [vmem:[%s312 + $0x20] sm:$0xff]
        %v359 = vld [vmem:[%s312 + $0x28] sm:$0xff]
        %v360 = vld [vmem:[%s312 + $0x30] sm:$0xff]
        %v361 = vld [vmem:[%s312 + $0x38] sm:$0xff]
        %v362 = vpack.c.bf16 %v355, %v354
        %v363 = vpack.c.bf16 %v357, %v356
        %v364 = vpack.c.bf16 %v359, %v358
        %v365 = vpack.c.bf16 %v361, %v360
        %v366 = vld [vmem:[#allocation5] sm:$0xff]
        %v367 = vld [vmem:[#allocation5 + $0x8] sm:$0xff]
        %v368 = vld [vmem:[#allocation5 + $0x10] sm:$0xff]
        %v369 = vld [vmem:[#allocation5 + $0x18] sm:$0xff]
        %v370 = vld [vmem:[#allocation5 + $0x20] sm:$0xff]
        %v371 = vld [vmem:[#allocation5 + $0x28] sm:$0xff]
        %v372 = vld [vmem:[#allocation5 + $0x30] sm:$0xff]
        %v373 = vld [vmem:[#allocation5 + $0x38] sm:$0xff]
        %v374 = vld [vmem:[#allocation5 + $0x40] sm:$0xff]
        %v375 = vld [vmem:[#allocation5 + $0x48] sm:$0xff]
        %v376 = vld [vmem:[#allocation5 + $0x50] sm:$0xff]
        %v377 = vld [vmem:[#allocation5 + $0x58] sm:$0xff]
        %v378 = vld [vmem:[#allocation5 + $0x60] sm:$0xff]
        %v379 = vld [vmem:[#allocation5 + $0x68] sm:$0xff]
        %v380 = vld [vmem:[#allocation5 + $0x70] sm:$0xff]
        %v381 = vld [vmem:[#allocation5 + $0x78] sm:$0xff]
        %v382 = vld [vmem:[#allocation5 + $0x80] sm:$0xff]
        %v383 = vld [vmem:[#allocation5 + $0x88] sm:$0xff]
        %v384 = vld [vmem:[#allocation5 + $0x90] sm:$0xff]
        %v385 = vld [vmem:[#allocation5 + $0x98] sm:$0xff]
        %v386 = vld [vmem:[#allocation5 + $0xa0] sm:$0xff]
        %v387 = vld [vmem:[#allocation5 + $0xa8] sm:$0xff]
        %v388 = vld [vmem:[#allocation5 + $0xb0] sm:$0xff]
        %v389 = vld [vmem:[#allocation5 + $0xb8] sm:$0xff]
        %v390 = vld [vmem:[#allocation5 + $0xc0] sm:$0xff]
        %v391 = vld [vmem:[#allocation5 + $0xc8] sm:$0xff]
        %v392 = vld [vmem:[#allocation5 + $0xd0] sm:$0xff]
        %v393 = vld [vmem:[#allocation5 + $0xd8] sm:$0xff]
        %v394 = vld [vmem:[#allocation5 + $0xe0] sm:$0xff]
        %v395 = vld [vmem:[#allocation5 + $0xe8] sm:$0xff]
        %v396 = vld [vmem:[#allocation5 + $0xf0] sm:$0xff]
        %v397 = vld [vmem:[#allocation5 + $0xf8] sm:$0xff]
        %v398 = vpack.c.bf16 %v368, %v366
        %v399 = vpack.c.bf16 %v369, %v367
        %v400 = vpack.c.bf16 %v372, %v370
        %v401 = vpack.c.bf16 %v373, %v371
        %v402 = vpack.c.bf16 %v376, %v374
        %v403 = vpack.c.bf16 %v377, %v375
        %v404 = vpack.c.bf16 %v380, %v378
        %v405 = vpack.c.bf16 %v381, %v379
        %v406 = vpack.c.bf16 %v384, %v382
        %v407 = vpack.c.bf16 %v385, %v383
        %v408 = vpack.c.bf16 %v388, %v386
        %v409 = vpack.c.bf16 %v389, %v387
        %v410 = vpack.c.bf16 %v392, %v390
        %v411 = vpack.c.bf16 %v393, %v391
        %v412 = vpack.c.bf16 %v396, %v394
        %v413 = vpack.c.bf16 %v397, %v395
        %v414 = vld [vmem:[%s3] sm:$0x3]
        %v416 = vlaneseq
        %v417 = vshrl.u32 %v416, 7
        %v418 = vsub.s32 0, %v417
        %v419 = vrot.slane %v414, %v418
        %v420 = vlaneseq
        %v421 = vshrl.u32 %v420, 7
        %v422 = vsub.s32 1, %v421
        %v423 = vrot.slane %v414, %v422
        %426 = vmatprep.subr.bf16.mxu0 %v413
        %427 = vmatpush1.bf16.msra.mxu0 %v412
        %428 = vmatprep.subr.bf16.mxu0 %v411
        %429 = vmatpush1.bf16.msra.mxu0 %v410
        %430 = vmatprep.subr.bf16.mxu0 %v409
        %431 = vmatpush1.bf16.msra.mxu0 %v408
        %432 = vmatprep.subr.bf16.mxu0 %v407
        %433 = vmatpush1.bf16.msra.mxu0 %v406
        %434 = vmatprep.subr.bf16.mxu0 %v405
        %435 = vmatpush1.bf16.msra.mxu0 %v404
        %436 = vmatprep.subr.bf16.mxu0 %v403
        %437 = vmatpush1.bf16.msra.mxu0 %v402
        %438 = vmatprep.subr.bf16.mxu0 %v401
        %439 = vmatpush1.bf16.msra.mxu0 %v400
        %440 = vmatprep.subr.bf16.mxu0 %v399
        %441 = vmatpush1.bf16.msra.mxu0 %v398
        %442 = vmatprep.subr.bf16.mxu0 0
        %443 = vmatpush2.bf16.msra.mxu0 0
        %444 = vmatprep.subr.bf16.mxu0 0
        %445 = vmatpush2.bf16.msra.mxu0 0
        %446 = vmatprep.subr.bf16.mxu0 0
        %447 = vmatpush2.bf16.msra.mxu0 0
        %448 = vmatprep.subr.bf16.mxu0 0
        %449 = vmatpush2.bf16.msra.mxu0 0
        %450 = vmatprep.subr.bf16.mxu0 0
        %451 = vmatpush2.bf16.msra.mxu0 0
        %452 = vmatprep.subr.bf16.mxu0 0
        %453 = vmatpush2.bf16.msra.mxu0 0
        %454 = vmatprep.subr.bf16.mxu0 0
        %455 = vmatpush2.bf16.msra.mxu0 0
        %456 = vmatprep.subr.bf16.mxu0 0
        %457 = vmatpush2.bf16.msra.mxu0 0
        %458 = vmatprep.mubr.bf16.mxu0 0
        %459 = vmatmul.mubr.bf16.gmra.mxu0 %v362
        %v460 = vpop.f32.mrf.mxu0
        %v461 = vadd.f32 %v419, %v460
        %v462 = vpop.f32.mrf.mxu0
        %v463 = vadd.f32 %v423, %v462
        %v464 = vpop.f32.mrf.mxu0
        %v465 = vadd.f32 %v419, %v464
        %v466 = vpop.f32.mrf.mxu0
        %v467 = vadd.f32 %v423, %v466
        %468 = vmatprep.mubr.bf16.mxu0 0
        %469 = vmatmul.mubr.bf16.gmra.mxu0 %v363
        %v470 = vpop.f32.mrf.mxu0
        %v471 = vadd.f32 %v419, %v470
        %v472 = vpop.f32.mrf.mxu0
        %v473 = vadd.f32 %v423, %v472
        %v474 = vpop.f32.mrf.mxu0
        %v475 = vadd.f32 %v419, %v474
        %v476 = vpop.f32.mrf.mxu0
        %v477 = vadd.f32 %v423, %v476
        %478 = vmatprep.mubr.bf16.mxu0 0
        %479 = vmatmul.mubr.bf16.gmra.mxu0 %v364
        %v480 = vpop.f32.mrf.mxu0
        %v481 = vadd.f32 %v419, %v480
        %v482 = vpop.f32.mrf.mxu0
        %v483 = vadd.f32 %v423, %v482
        %v484 = vpop.f32.mrf.mxu0
        %v485 = vadd.f32 %v419, %v484
        %v486 = vpop.f32.mrf.mxu0
        %v487 = vadd.f32 %v423, %v486
        %488 = vmatprep.mubr.bf16.mxu0 0
        %489 = vmatmul.mubr.bf16.gmra.mxu0 %v365
        %v490 = vpop.f32.mrf.mxu0
        %v491 = vadd.f32 %v419, %v490
        %v492 = vpop.f32.mrf.mxu0
        %v493 = vadd.f32 %v423, %v492
        %v494 = vpop.f32.mrf.mxu0
        %v495 = vadd.f32 %v419, %v494
        %v496 = vpop.f32.mrf.mxu0
        %v497 = vadd.f32 %v423, %v496
        %498 = vdwg.mxu0
        %s499 = scalar_lea.vmem %s4, 4
        %v500 = vld [vmem:[%s499] ss:$8 sm:$0x3]
        %v502 = vlaneseq
        %v503 = vshrl.u32 %v502, 7
        %v504 = vsub.s32 0, %v503
        %v505 = vrot.slane %v500, %v504
        %v506 = vlaneseq
        %v507 = vshrl.u32 %v506, 7
        %v508 = vsub.s32 1, %v507
        %v509 = vrot.slane %v500, %v508
        %v512 = vmul.f32 %v461, %v505
        %v513 = vmul.f32 %v463, %v509
        %v514 = vmul.f32 %v465, %v505
        %v515 = vmul.f32 %v467, %v509
        %v516 = vmul.f32 %v471, %v505
        %v517 = vmul.f32 %v473, %v509
        %v518 = vmul.f32 %v475, %v505
        %v519 = vmul.f32 %v477, %v509
        %v520 = vmul.f32 %v481, %v505
        %v521 = vmul.f32 %v483, %v509
        %v522 = vmul.f32 %v485, %v505
        %v523 = vmul.f32 %v487, %v509
        %v524 = vmul.f32 %v491, %v505
        %v525 = vmul.f32 %v493, %v509
        %v526 = vmul.f32 %v495, %v505
        %v527 = vmul.f32 %v497, %v509
        %v528 = vrot.slane %v461, 7
        %v529 = vrot.slane %v463, 7
        %v530 = vrot.slane %v465, 7
        %v531 = vrot.slane %v467, 7
        %v532 = vrot.slane %v471, 7
        %v533 = vrot.slane %v473, 7
        %v534 = vrot.slane %v475, 7
        %v535 = vrot.slane %v477, 7
        %v536 = vrot.slane %v481, 7
        %v537 = vrot.slane %v483, 7
        %v538 = vrot.slane %v485, 7
        %v539 = vrot.slane %v487, 7
        %v540 = vrot.slane %v491, 7
        %v541 = vrot.slane %v493, 7
        %v542 = vrot.slane %v495, 7
        %v543 = vrot.slane %v497, 7
        %v544 = vlaneseq
        %v545 = vshrl.u32 %v544, 7
        %vm546 = vcmp.lt.s32.totalorder %v545, 1
        %v547 = vsel %vm546, %v540, %v542
        %v548 = vsel %vm546, %v541, %v543
        %v549 = vsel %vm546, %v538, %v540
        %v550 = vsel %vm546, %v539, %v541
        %v551 = vsel %vm546, %v536, %v538
        %v552 = vsel %vm546, %v537, %v539
        %v553 = vsel %vm546, %v534, %v536
        %v554 = vsel %vm546, %v535, %v537
        %v555 = vsel %vm546, %v532, %v534
        %v556 = vsel %vm546, %v533, %v535
        %v557 = vsel %vm546, %v530, %v532
        %v558 = vsel %vm546, %v531, %v533
        %v559 = vsel %vm546, %v528, %v530
        %v560 = vsel %vm546, %v529, %v531
        %v561 = vsel %vm546, %v542, %v528
        %v562 = vsel %vm546, %v543, %v529
        %v563 = vld [vmem:[%s1] sm:$0xff]
        %v564 = vld [vmem:[%s1 + $0x8] sm:$0xff]
        %v565 = vld [vmem:[%s1 + $0x10] sm:$0xff]
        %v566 = vld [vmem:[%s1 + $0x18] sm:$0xff]
        %v567 = vld [vmem:[%s1 + $0x20] sm:$0xff]
        %v568 = vld [vmem:[%s1 + $0x28] sm:$0xff]
        %v569 = vld [vmem:[%s1 + $0x30] sm:$0xff]
        %v570 = vld [vmem:[%s1 + $0x38] sm:$0xff]
        %572 = vset.pattern.permute.xlu0 0
        %573 = vperm.xlu0 %572, %v563
        %v574 = vpop.permute.xlu0 %573
        %577 = vset.pattern.permute.xlu0 0
        %578 = vperm.xlu0 %577, %v564
        %v579 = vpop.permute.xlu0 %578
        %582 = vset.pattern.permute.xlu0 0
        %583 = vperm.xlu0 %582, %v565
        %v584 = vpop.permute.xlu0 %583
        %587 = vset.pattern.permute.xlu0 0
        %588 = vperm.xlu0 %587, %v566
        %v589 = vpop.permute.xlu0 %588
        %592 = vset.pattern.permute.xlu0 0
        %593 = vperm.xlu0 %592, %v567
        %v594 = vpop.permute.xlu0 %593
        %597 = vset.pattern.permute.xlu0 0
        %598 = vperm.xlu0 %597, %v568
        %v599 = vpop.permute.xlu0 %598
        %602 = vset.pattern.permute.xlu0 0
        %603 = vperm.xlu0 %602, %v569
        %v604 = vpop.permute.xlu0 %603
        %607 = vset.pattern.permute.xlu0 0
        %608 = vperm.xlu0 %607, %v570
        %v609 = vpop.permute.xlu0 %608
        %v611 = vmul.f32 %v547, %v574
        %v612 = vmul.f32 %v548, %v574
        %v613 = vmul.f32 %v561, %v579
        %v614 = vmul.f32 %v562, %v579
        %v615 = vmul.f32 %v559, %v584
        %v616 = vmul.f32 %v560, %v584
        %v617 = vmul.f32 %v557, %v589
        %v618 = vmul.f32 %v558, %v589
        %v619 = vmul.f32 %v555, %v594
        %v620 = vmul.f32 %v556, %v594
        %v621 = vmul.f32 %v553, %v599
        %v622 = vmul.f32 %v554, %v599
        %v623 = vmul.f32 %v551, %v604
        %v624 = vmul.f32 %v552, %v604
        %v625 = vmul.f32 %v549, %v609
        %v626 = vmul.f32 %v550, %v609
        %v627 = vld [vmem:[%s4] ss:$8 sm:$0x3]
        %v629 = vlaneseq
        %v630 = vshrl.u32 %v629, 7
        %v631 = vsub.s32 0, %v630
        %v632 = vrot.slane %v627, %v631
        %v633 = vlaneseq
        %v634 = vshrl.u32 %v633, 7
        %v635 = vsub.s32 1, %v634
        %v636 = vrot.slane %v627, %v635
        %v639 = vmul.f32 %v611, %v632
        %v640 = vmul.f32 %v612, %v636
        %v641 = vmul.f32 %v613, %v632
        %v642 = vmul.f32 %v614, %v636
        %v643 = vmul.f32 %v615, %v632
        %v644 = vmul.f32 %v616, %v636
        %v645 = vmul.f32 %v617, %v632
        %v646 = vmul.f32 %v618, %v636
        %v647 = vmul.f32 %v619, %v632
        %v648 = vmul.f32 %v620, %v636
        %v649 = vmul.f32 %v621, %v632
        %v650 = vmul.f32 %v622, %v636
        %v651 = vmul.f32 %v623, %v632
        %v652 = vmul.f32 %v624, %v636
        %v653 = vmul.f32 %v625, %v632
        %v654 = vmul.f32 %v626, %v636
        %v655 = vadd.f32 %v512, %v639
        %v656 = vadd.f32 %v513, %v640
        %v657 = vadd.f32 %v514, %v641
        %v658 = vadd.f32 %v515, %v642
        %v659 = vadd.f32 %v516, %v643
        %v660 = vadd.f32 %v517, %v644
        %v661 = vadd.f32 %v518, %v645
        %v662 = vadd.f32 %v519, %v646
        %v663 = vadd.f32 %v520, %v647
        %v664 = vadd.f32 %v521, %v648
        %v665 = vadd.f32 %v522, %v649
        %v666 = vadd.f32 %v523, %v650
        %v667 = vadd.f32 %v524, %v651
        %v668 = vadd.f32 %v525, %v652
        %v669 = vadd.f32 %v526, %v653
        %v670 = vadd.f32 %v527, %v654
        %671 = vset.pattern.permute.xlu0 1
        %672 = vperm.xlu0 %671, %v563
        %v673 = vpop.permute.xlu0 %672
        %675 = vset.pattern.permute.xlu0 1
        %676 = vperm.xlu0 %675, %v564
        %v677 = vpop.permute.xlu0 %676
        %679 = vset.pattern.permute.xlu0 1
        %680 = vperm.xlu0 %679, %v565
        %v681 = vpop.permute.xlu0 %680
        %683 = vset.pattern.permute.xlu0 1
        %684 = vperm.xlu0 %683, %v566
        %v685 = vpop.permute.xlu0 %684
        %687 = vset.pattern.permute.xlu0 1
        %688 = vperm.xlu0 %687, %v567
        %v689 = vpop.permute.xlu0 %688
        %691 = vset.pattern.permute.xlu0 1
        %692 = vperm.xlu0 %691, %v568
        %v693 = vpop.permute.xlu0 %692
        %695 = vset.pattern.permute.xlu0 1
        %696 = vperm.xlu0 %695, %v569
        %v697 = vpop.permute.xlu0 %696
        %699 = vset.pattern.permute.xlu0 1
        %700 = vperm.xlu0 %699, %v570
        %v701 = vpop.permute.xlu0 %700
        %v703 = vmul.f32 %v495, %v673
        %v704 = vmul.f32 %v497, %v673
        %v705 = vmul.f32 %v461, %v677
        %v706 = vmul.f32 %v463, %v677
        %v707 = vmul.f32 %v465, %v681
        %v708 = vmul.f32 %v467, %v681
        %v709 = vmul.f32 %v471, %v685
        %v710 = vmul.f32 %v473, %v685
        %v711 = vmul.f32 %v475, %v689
        %v712 = vmul.f32 %v477, %v689
        %v713 = vmul.f32 %v481, %v693
        %v714 = vmul.f32 %v483, %v693
        %v715 = vmul.f32 %v485, %v697
        %v716 = vmul.f32 %v487, %v697
        %v717 = vmul.f32 %v491, %v701
        %v718 = vmul.f32 %v493, %v701
        %s719 = scalar_lea.vmem %s4, 1
        %v720 = vld [vmem:[%s719] ss:$8 sm:$0x3]
        %v722 = vlaneseq
        %v723 = vshrl.u32 %v722, 7
        %v724 = vsub.s32 0, %v723
        %v725 = vrot.slane %v720, %v724
        %v726 = vlaneseq
        %v727 = vshrl.u32 %v726, 7
        %v728 = vsub.s32 1, %v727
        %v729 = vrot.slane %v720, %v728
        %v732 = vmul.f32 %v703, %v725
        %v733 = vmul.f32 %v704, %v729
        %v734 = vmul.f32 %v705, %v725
        %v735 = vmul.f32 %v706, %v729
        %v736 = vmul.f32 %v707, %v725
        %v737 = vmul.f32 %v708, %v729
        %v738 = vmul.f32 %v709, %v725
        %v739 = vmul.f32 %v710, %v729
        %v740 = vmul.f32 %v711, %v725
        %v741 = vmul.f32 %v712, %v729
        %v742 = vmul.f32 %v713, %v725
        %v743 = vmul.f32 %v714, %v729
        %v744 = vmul.f32 %v715, %v725
        %v745 = vmul.f32 %v716, %v729
        %v746 = vmul.f32 %v717, %v725
        %v747 = vmul.f32 %v718, %v729
        %v748 = vadd.f32 %v655, %v732
        %v749 = vadd.f32 %v656, %v733
        %v750 = vadd.f32 %v657, %v734
        %v751 = vadd.f32 %v658, %v735
        %v752 = vadd.f32 %v659, %v736
        %v753 = vadd.f32 %v660, %v737
        %v754 = vadd.f32 %v661, %v738
        %v755 = vadd.f32 %v662, %v739
        %v756 = vadd.f32 %v663, %v740
        %v757 = vadd.f32 %v664, %v741
        %v758 = vadd.f32 %v665, %v742
        %v759 = vadd.f32 %v666, %v743
        %v760 = vadd.f32 %v667, %v744
        %v761 = vadd.f32 %v668, %v745
        %v762 = vadd.f32 %v669, %v746
        %v763 = vadd.f32 %v670, %v747
        %v764 = vrot.slane %v461, 1
        %v765 = vrot.slane %v463, 1
        %v766 = vrot.slane %v465, 1
        %v767 = vrot.slane %v467, 1
        %v768 = vrot.slane %v471, 1
        %v769 = vrot.slane %v473, 1
        %v770 = vrot.slane %v475, 1
        %v771 = vrot.slane %v477, 1
        %v772 = vrot.slane %v481, 1
        %v773 = vrot.slane %v483, 1
        %v774 = vrot.slane %v485, 1
        %v775 = vrot.slane %v487, 1
        %v776 = vrot.slane %v491, 1
        %v777 = vrot.slane %v493, 1
        %v778 = vrot.slane %v495, 1
        %v779 = vrot.slane %v497, 1
        %vm780 = vcmp.lt.s32.totalorder %v545, 7
        %v781 = vsel %vm780, %v776, %v778
        %v782 = vsel %vm780, %v777, %v779
        %v783 = vsel %vm780, %v774, %v776
        %v784 = vsel %vm780, %v775, %v777
        %v785 = vsel %vm780, %v772, %v774
        %v786 = vsel %vm780, %v773, %v775
        %v787 = vsel %vm780, %v770, %v772
        %v788 = vsel %vm780, %v771, %v773
        %v789 = vsel %vm780, %v768, %v770
        %v790 = vsel %vm780, %v769, %v771
        %v791 = vsel %vm780, %v766, %v768
        %v792 = vsel %vm780, %v767, %v769
        %v793 = vsel %vm780, %v764, %v766
        %v794 = vsel %vm780, %v765, %v767
        %v795 = vsel %vm780, %v778, %v764
        %v796 = vsel %vm780, %v779, %v765
        %797 = vset.pattern.permute.xlu0 2
        %798 = vperm.xlu0 %797, %v563
        %v799 = vpop.permute.xlu0 %798
        %801 = vset.pattern.permute.xlu0 2
        %802 = vperm.xlu0 %801, %v564
        %v803 = vpop.permute.xlu0 %802
        %805 = vset.pattern.permute.xlu0 2
        %806 = vperm.xlu0 %805, %v565
        %v807 = vpop.permute.xlu0 %806
        %809 = vset.pattern.permute.xlu0 2
        %810 = vperm.xlu0 %809, %v566
        %v811 = vpop.permute.xlu0 %810
        %813 = vset.pattern.permute.xlu0 2
        %814 = vperm.xlu0 %813, %v567
        %v815 = vpop.permute.xlu0 %814
        %817 = vset.pattern.permute.xlu0 2
        %818 = vperm.xlu0 %817, %v568
        %v819 = vpop.permute.xlu0 %818
        %821 = vset.pattern.permute.xlu0 2
        %822 = vperm.xlu0 %821, %v569
        %v823 = vpop.permute.xlu0 %822
        %825 = vset.pattern.permute.xlu0 2
        %826 = vperm.xlu0 %825, %v570
        %v827 = vpop.permute.xlu0 %826
        %v829 = vmul.f32 %v795, %v799
        %v830 = vmul.f32 %v796, %v799
        %v831 = vmul.f32 %v793, %v803
        %v832 = vmul.f32 %v794, %v803
        %v833 = vmul.f32 %v791, %v807
        %v834 = vmul.f32 %v792, %v807
        %v835 = vmul.f32 %v789, %v811
        %v836 = vmul.f32 %v790, %v811
        %v837 = vmul.f32 %v787, %v815
        %v838 = vmul.f32 %v788, %v815
        %v839 = vmul.f32 %v785, %v819
        %v840 = vmul.f32 %v786, %v819
        %v841 = vmul.f32 %v783, %v823
        %v842 = vmul.f32 %v784, %v823
        %v843 = vmul.f32 %v781, %v827
        %v844 = vmul.f32 %v782, %v827
        %s845 = scalar_lea.vmem %s4, 2
        %v846 = vld [vmem:[%s845] ss:$8 sm:$0x3]
        %v848 = vlaneseq
        %v849 = vshrl.u32 %v848, 7
        %v850 = vsub.s32 0, %v849
        %v851 = vrot.slane %v846, %v850
        %v852 = vlaneseq
        %v853 = vshrl.u32 %v852, 7
        %v854 = vsub.s32 1, %v853
        %v855 = vrot.slane %v846, %v854
        %v858 = vmul.f32 %v829, %v851
        %v859 = vmul.f32 %v830, %v855
        %v860 = vmul.f32 %v831, %v851
        %v861 = vmul.f32 %v832, %v855
        %v862 = vmul.f32 %v833, %v851
        %v863 = vmul.f32 %v834, %v855
        %v864 = vmul.f32 %v835, %v851
        %v865 = vmul.f32 %v836, %v855
        %v866 = vmul.f32 %v837, %v851
        %v867 = vmul.f32 %v838, %v855
        %v868 = vmul.f32 %v839, %v851
        %v869 = vmul.f32 %v840, %v855
        %v870 = vmul.f32 %v841, %v851
        %v871 = vmul.f32 %v842, %v855
        %v872 = vmul.f32 %v843, %v851
        %v873 = vmul.f32 %v844, %v855
        %v874 = vadd.f32 %v748, %v858
        %v875 = vadd.f32 %v749, %v859
        %v876 = vadd.f32 %v750, %v860
        %v877 = vadd.f32 %v751, %v861
        %v878 = vadd.f32 %v752, %v862
        %v879 = vadd.f32 %v753, %v863
        %v880 = vadd.f32 %v754, %v864
        %v881 = vadd.f32 %v755, %v865
        %v882 = vadd.f32 %v756, %v866
        %v883 = vadd.f32 %v757, %v867
        %v884 = vadd.f32 %v758, %v868
        %v885 = vadd.f32 %v759, %v869
        %v886 = vadd.f32 %v760, %v870
        %v887 = vadd.f32 %v761, %v871
        %v888 = vadd.f32 %v762, %v872
        %v889 = vadd.f32 %v763, %v873
        %890 = vset.pattern.permute.xlu0 3
        %891 = vperm.xlu0 %890, %v563
        %v892 = vpop.permute.xlu0 %891
        %894 = vset.pattern.permute.xlu0 3
        %895 = vperm.xlu0 %894, %v564
        %v896 = vpop.permute.xlu0 %895
        %898 = vset.pattern.permute.xlu0 3
        %899 = vperm.xlu0 %898, %v565
        %v900 = vpop.permute.xlu0 %899
        %902 = vset.pattern.permute.xlu0 3
        %903 = vperm.xlu0 %902, %v566
        %v904 = vpop.permute.xlu0 %903
        %906 = vset.pattern.permute.xlu0 3
        %907 = vperm.xlu0 %906, %v567
        %v908 = vpop.permute.xlu0 %907
        %910 = vset.pattern.permute.xlu0 3
        %911 = vperm.xlu0 %910, %v568
        %v912 = vpop.permute.xlu0 %911
        %914 = vset.pattern.permute.xlu0 3
        %915 = vperm.xlu0 %914, %v569
        %v916 = vpop.permute.xlu0 %915
        %918 = vset.pattern.permute.xlu0 3
        %919 = vperm.xlu0 %918, %v570
        %v920 = vpop.permute.xlu0 %919
        %v922 = vmul.f32 %v561, %v892
        %v923 = vmul.f32 %v562, %v892
        %v924 = vmul.f32 %v559, %v896
        %v925 = vmul.f32 %v560, %v896
        %v926 = vmul.f32 %v557, %v900
        %v927 = vmul.f32 %v558, %v900
        %v928 = vmul.f32 %v555, %v904
        %v929 = vmul.f32 %v556, %v904
        %v930 = vmul.f32 %v553, %v908
        %v931 = vmul.f32 %v554, %v908
        %v932 = vmul.f32 %v551, %v912
        %v933 = vmul.f32 %v552, %v912
        %v934 = vmul.f32 %v549, %v916
        %v935 = vmul.f32 %v550, %v916
        %v936 = vmul.f32 %v547, %v920
        %v937 = vmul.f32 %v548, %v920
        %s938 = scalar_lea.vmem %s4, 3
        %v939 = vld [vmem:[%s938] ss:$8 sm:$0x3]
        %v941 = vlaneseq
        %v942 = vshrl.u32 %v941, 7
        %v943 = vsub.s32 0, %v942
        %v944 = vrot.slane %v939, %v943
        %v945 = vlaneseq
        %v946 = vshrl.u32 %v945, 7
        %v947 = vsub.s32 1, %v946
        %v948 = vrot.slane %v939, %v947
        %v951 = vmul.f32 %v922, %v944
        %v952 = vmul.f32 %v923, %v948
        %v953 = vmul.f32 %v924, %v944
        %v954 = vmul.f32 %v925, %v948
        %v955 = vmul.f32 %v926, %v944
        %v956 = vmul.f32 %v927, %v948
        %v957 = vmul.f32 %v928, %v944
        %v958 = vmul.f32 %v929, %v948
        %v959 = vmul.f32 %v930, %v944
        %v960 = vmul.f32 %v931, %v948
        %v961 = vmul.f32 %v932, %v944
        %v962 = vmul.f32 %v933, %v948
        %v963 = vmul.f32 %v934, %v944
        %v964 = vmul.f32 %v935, %v948
        %v965 = vmul.f32 %v936, %v944
        %v966 = vmul.f32 %v937, %v948
        %v967 = vadd.f32 %v874, %v951
        %v968 = vadd.f32 %v875, %v952
        %v969 = vadd.f32 %v876, %v953
        %v970 = vadd.f32 %v877, %v954
        %v971 = vadd.f32 %v878, %v955
        %v972 = vadd.f32 %v879, %v956
        %v973 = vadd.f32 %v880, %v957
        %v974 = vadd.f32 %v881, %v958
        %v975 = vadd.f32 %v882, %v959
        %v976 = vadd.f32 %v883, %v960
        %v977 = vadd.f32 %v884, %v961
        %v978 = vadd.f32 %v885, %v962
        %v979 = vadd.f32 %v886, %v963
        %v980 = vadd.f32 %v887, %v964
        %v981 = vadd.f32 %v888, %v965
        %v982 = vadd.f32 %v889, %v966
        %983 = vset.pattern.permute.xlu0 5
        %984 = vperm.xlu0 %983, %v563
        %v985 = vpop.permute.xlu0 %984
        %987 = vset.pattern.permute.xlu0 5
        %988 = vperm.xlu0 %987, %v564
        %v989 = vpop.permute.xlu0 %988
        %991 = vset.pattern.permute.xlu0 5
        %992 = vperm.xlu0 %991, %v565
        %v993 = vpop.permute.xlu0 %992
        %995 = vset.pattern.permute.xlu0 5
        %996 = vperm.xlu0 %995, %v566
        %v997 = vpop.permute.xlu0 %996
        %999 = vset.pattern.permute.xlu0 5
        %1000 = vperm.xlu0 %999, %v567
        %v1001 = vpop.permute.xlu0 %1000
        %1003 = vset.pattern.permute.xlu0 5
        %1004 = vperm.xlu0 %1003, %v568
        %v1005 = vpop.permute.xlu0 %1004
        %1007 = vset.pattern.permute.xlu0 5
        %1008 = vperm.xlu0 %1007, %v569
        %v1009 = vpop.permute.xlu0 %1008
        %1011 = vset.pattern.permute.xlu0 5
        %1012 = vperm.xlu0 %1011, %v570
        %v1013 = vpop.permute.xlu0 %1012
        %v1015 = vmul.f32 %v793, %v985
        %v1016 = vmul.f32 %v794, %v985
        %v1017 = vmul.f32 %v791, %v989
        %v1018 = vmul.f32 %v792, %v989
        %v1019 = vmul.f32 %v789, %v993
        %v1020 = vmul.f32 %v790, %v993
        %v1021 = vmul.f32 %v787, %v997
        %v1022 = vmul.f32 %v788, %v997
        %v1023 = vmul.f32 %v785, %v1001
        %v1024 = vmul.f32 %v786, %v1001
        %v1025 = vmul.f32 %v783, %v1005
        %v1026 = vmul.f32 %v784, %v1005
        %v1027 = vmul.f32 %v781, %v1009
        %v1028 = vmul.f32 %v782, %v1009
        %v1029 = vmul.f32 %v795, %v1013
        %v1030 = vmul.f32 %v796, %v1013
        %s1031 = scalar_lea.vmem %s4, 5
        %v1032 = vld [vmem:[%s1031] ss:$8 sm:$0x3]
        %v1034 = vlaneseq
        %v1035 = vshrl.u32 %v1034, 7
        %v1036 = vsub.s32 0, %v1035
        %v1037 = vrot.slane %v1032, %v1036
        %v1038 = vlaneseq
        %v1039 = vshrl.u32 %v1038, 7
        %v1040 = vsub.s32 1, %v1039
        %v1041 = vrot.slane %v1032, %v1040
        %v1044 = vmul.f32 %v1015, %v1037
        %v1045 = vmul.f32 %v1016, %v1041
        %v1046 = vmul.f32 %v1017, %v1037
        %v1047 = vmul.f32 %v1018, %v1041
        %v1048 = vmul.f32 %v1019, %v1037
        %v1049 = vmul.f32 %v1020, %v1041
        %v1050 = vmul.f32 %v1021, %v1037
        %v1051 = vmul.f32 %v1022, %v1041
        %v1052 = vmul.f32 %v1023, %v1037
        %v1053 = vmul.f32 %v1024, %v1041
        %v1054 = vmul.f32 %v1025, %v1037
        %v1055 = vmul.f32 %v1026, %v1041
        %v1056 = vmul.f32 %v1027, %v1037
        %v1057 = vmul.f32 %v1028, %v1041
        %v1058 = vmul.f32 %v1029, %v1037
        %v1059 = vmul.f32 %v1030, %v1041
        %v1060 = vadd.f32 %v967, %v1044
        %v1061 = vadd.f32 %v968, %v1045
        %v1062 = vadd.f32 %v969, %v1046
        %v1063 = vadd.f32 %v970, %v1047
        %v1064 = vadd.f32 %v971, %v1048
        %v1065 = vadd.f32 %v972, %v1049
        %v1066 = vadd.f32 %v973, %v1050
        %v1067 = vadd.f32 %v974, %v1051
        %v1068 = vadd.f32 %v975, %v1052
        %v1069 = vadd.f32 %v976, %v1053
        %v1070 = vadd.f32 %v977, %v1054
        %v1071 = vadd.f32 %v978, %v1055
        %v1072 = vadd.f32 %v979, %v1056
        %v1073 = vadd.f32 %v980, %v1057
        %v1074 = vadd.f32 %v981, %v1058
        %v1075 = vadd.f32 %v982, %v1059
        %1076 = vset.pattern.permute.xlu0 6
        %1077 = vperm.xlu0 %1076, %v563
        %v1078 = vpop.permute.xlu0 %1077
        %1080 = vset.pattern.permute.xlu0 6
        %1081 = vperm.xlu0 %1080, %v564
        %v1082 = vpop.permute.xlu0 %1081
        %1084 = vset.pattern.permute.xlu0 6
        %1085 = vperm.xlu0 %1084, %v565
        %v1086 = vpop.permute.xlu0 %1085
        %1088 = vset.pattern.permute.xlu0 6
        %1089 = vperm.xlu0 %1088, %v566
        %v1090 = vpop.permute.xlu0 %1089
        %1092 = vset.pattern.permute.xlu0 6
        %1093 = vperm.xlu0 %1092, %v567
        %v1094 = vpop.permute.xlu0 %1093
        %1096 = vset.pattern.permute.xlu0 6
        %1097 = vperm.xlu0 %1096, %v568
        %v1098 = vpop.permute.xlu0 %1097
        %1100 = vset.pattern.permute.xlu0 6
        %1101 = vperm.xlu0 %1100, %v569
        %v1102 = vpop.permute.xlu0 %1101
        %1104 = vset.pattern.permute.xlu0 6
        %1105 = vperm.xlu0 %1104, %v570
        %v1106 = vpop.permute.xlu0 %1105
        %v1108 = vmul.f32 %v559, %v1078
        %v1109 = vmul.f32 %v560, %v1078
        %v1110 = vmul.f32 %v557, %v1082
        %v1111 = vmul.f32 %v558, %v1082
        %v1112 = vmul.f32 %v555, %v1086
        %v1113 = vmul.f32 %v556, %v1086
        %v1114 = vmul.f32 %v553, %v1090
        %v1115 = vmul.f32 %v554, %v1090
        %v1116 = vmul.f32 %v551, %v1094
        %v1117 = vmul.f32 %v552, %v1094
        %v1118 = vmul.f32 %v549, %v1098
        %v1119 = vmul.f32 %v550, %v1098
        %v1120 = vmul.f32 %v547, %v1102
        %v1121 = vmul.f32 %v548, %v1102
        %v1122 = vmul.f32 %v561, %v1106
        %v1123 = vmul.f32 %v562, %v1106
        %s1124 = scalar_lea.vmem %s4, 6
        %v1125 = vld [vmem:[%s1124] ss:$8 sm:$0x3]
        %v1127 = vlaneseq
        %v1128 = vshrl.u32 %v1127, 7
        %v1129 = vsub.s32 0, %v1128
        %v1130 = vrot.slane %v1125, %v1129
        %v1131 = vlaneseq
        %v1132 = vshrl.u32 %v1131, 7
        %v1133 = vsub.s32 1, %v1132
        %v1134 = vrot.slane %v1125, %v1133
        %v1137 = vmul.f32 %v1108, %v1130
        %v1138 = vmul.f32 %v1109, %v1134
        %v1139 = vmul.f32 %v1110, %v1130
        %v1140 = vmul.f32 %v1111, %v1134
        %v1141 = vmul.f32 %v1112, %v1130
        %v1142 = vmul.f32 %v1113, %v1134
        %v1143 = vmul.f32 %v1114, %v1130
        %v1144 = vmul.f32 %v1115, %v1134
        %v1145 = vmul.f32 %v1116, %v1130
        %v1146 = vmul.f32 %v1117, %v1134
        %v1147 = vmul.f32 %v1118, %v1130
        %v1148 = vmul.f32 %v1119, %v1134
        %v1149 = vmul.f32 %v1120, %v1130
        %v1150 = vmul.f32 %v1121, %v1134
        %v1151 = vmul.f32 %v1122, %v1130
        %v1152 = vmul.f32 %v1123, %v1134
        %v1153 = vadd.f32 %v1060, %v1137
        %v1154 = vadd.f32 %v1061, %v1138
        %v1155 = vadd.f32 %v1062, %v1139
        %v1156 = vadd.f32 %v1063, %v1140
        %v1157 = vadd.f32 %v1064, %v1141
        %v1158 = vadd.f32 %v1065, %v1142
        %v1159 = vadd.f32 %v1066, %v1143
        %v1160 = vadd.f32 %v1067, %v1144
        %v1161 = vadd.f32 %v1068, %v1145
        %v1162 = vadd.f32 %v1069, %v1146
        %v1163 = vadd.f32 %v1070, %v1147
        %v1164 = vadd.f32 %v1071, %v1148
        %v1165 = vadd.f32 %v1072, %v1149
        %v1166 = vadd.f32 %v1073, %v1150
        %v1167 = vadd.f32 %v1074, %v1151
        %v1168 = vadd.f32 %v1075, %v1152
        %1169 = vset.pattern.permute.xlu0 7
        %1170 = vperm.xlu0 %1169, %v563
        %v1171 = vpop.permute.xlu0 %1170
        %1173 = vset.pattern.permute.xlu0 7
        %1174 = vperm.xlu0 %1173, %v564
        %v1175 = vpop.permute.xlu0 %1174
        %1177 = vset.pattern.permute.xlu0 7
        %1178 = vperm.xlu0 %1177, %v565
        %v1179 = vpop.permute.xlu0 %1178
        %1181 = vset.pattern.permute.xlu0 7
        %1182 = vperm.xlu0 %1181, %v566
        %v1183 = vpop.permute.xlu0 %1182
        %1185 = vset.pattern.permute.xlu0 7
        %1186 = vperm.xlu0 %1185, %v567
        %v1187 = vpop.permute.xlu0 %1186
        %1189 = vset.pattern.permute.xlu0 7
        %1190 = vperm.xlu0 %1189, %v568
        %v1191 = vpop.permute.xlu0 %1190
        %1193 = vset.pattern.permute.xlu0 7
        %1194 = vperm.xlu0 %1193, %v569
        %v1195 = vpop.permute.xlu0 %1194
        %1197 = vset.pattern.permute.xlu0 7
        %1198 = vperm.xlu0 %1197, %v570
        %v1199 = vpop.permute.xlu0 %1198
        %v1201 = vmul.f32 %v465, %v1171
        %v1202 = vmul.f32 %v467, %v1171
        %v1203 = vmul.f32 %v471, %v1175
        %v1204 = vmul.f32 %v473, %v1175
        %v1205 = vmul.f32 %v475, %v1179
        %v1206 = vmul.f32 %v477, %v1179
        %v1207 = vmul.f32 %v481, %v1183
        %v1208 = vmul.f32 %v483, %v1183
        %v1209 = vmul.f32 %v485, %v1187
        %v1210 = vmul.f32 %v487, %v1187
        %v1211 = vmul.f32 %v491, %v1191
        %v1212 = vmul.f32 %v493, %v1191
        %v1213 = vmul.f32 %v495, %v1195
        %v1214 = vmul.f32 %v497, %v1195
        %v1215 = vmul.f32 %v461, %v1199
        %v1216 = vmul.f32 %v463, %v1199
        %s1217 = scalar_lea.vmem %s4, 7
        %v1218 = vld [vmem:[%s1217] ss:$8 sm:$0x3]
        %v1220 = vlaneseq
        %v1221 = vshrl.u32 %v1220, 7
        %v1222 = vsub.s32 0, %v1221
        %v1223 = vrot.slane %v1218, %v1222
        %v1224 = vlaneseq
        %v1225 = vshrl.u32 %v1224, 7
        %v1226 = vsub.s32 1, %v1225
        %v1227 = vrot.slane %v1218, %v1226
        %v1230 = vmul.f32 %v1201, %v1223
        %v1231 = vmul.f32 %v1202, %v1227
        %v1232 = vmul.f32 %v1203, %v1223
        %v1233 = vmul.f32 %v1204, %v1227
        %v1234 = vmul.f32 %v1205, %v1223
        %v1235 = vmul.f32 %v1206, %v1227
        %v1236 = vmul.f32 %v1207, %v1223
        %v1237 = vmul.f32 %v1208, %v1227
        %v1238 = vmul.f32 %v1209, %v1223
        %v1239 = vmul.f32 %v1210, %v1227
        %v1240 = vmul.f32 %v1211, %v1223
        %v1241 = vmul.f32 %v1212, %v1227
        %v1242 = vmul.f32 %v1213, %v1223
        %v1243 = vmul.f32 %v1214, %v1227
        %v1244 = vmul.f32 %v1215, %v1223
        %v1245 = vmul.f32 %v1216, %v1227
        %v1246 = vadd.f32 %v1153, %v1230
        %v1247 = vadd.f32 %v1154, %v1231
        %v1248 = vadd.f32 %v1155, %v1232
        %v1249 = vadd.f32 %v1156, %v1233
        %v1250 = vadd.f32 %v1157, %v1234
        %v1251 = vadd.f32 %v1158, %v1235
        %v1252 = vadd.f32 %v1159, %v1236
        %v1253 = vadd.f32 %v1160, %v1237
        %v1254 = vadd.f32 %v1161, %v1238
        %v1255 = vadd.f32 %v1162, %v1239
        %v1256 = vadd.f32 %v1163, %v1240
        %v1257 = vadd.f32 %v1164, %v1241
        %v1258 = vadd.f32 %v1165, %v1242
        %v1259 = vadd.f32 %v1166, %v1243
        %v1260 = vadd.f32 %v1167, %v1244
        %v1261 = vadd.f32 %v1168, %v1245
        %1262 = vset.pattern.permute.xlu0 8
        %1263 = vperm.xlu0 %1262, %v563
        %v1264 = vpop.permute.xlu0 %1263
        %1266 = vset.pattern.permute.xlu0 8
        %1267 = vperm.xlu0 %1266, %v564
        %v1268 = vpop.permute.xlu0 %1267
        %1270 = vset.pattern.permute.xlu0 8
        %1271 = vperm.xlu0 %1270, %v565
        %v1272 = vpop.permute.xlu0 %1271
        %1274 = vset.pattern.permute.xlu0 8
        %1275 = vperm.xlu0 %1274, %v566
        %v1276 = vpop.permute.xlu0 %1275
        %1278 = vset.pattern.permute.xlu0 8
        %1279 = vperm.xlu0 %1278, %v567
        %v1280 = vpop.permute.xlu0 %1279
        %1282 = vset.pattern.permute.xlu0 8
        %1283 = vperm.xlu0 %1282, %v568
        %v1284 = vpop.permute.xlu0 %1283
        %1286 = vset.pattern.permute.xlu0 8
        %1287 = vperm.xlu0 %1286, %v569
        %v1288 = vpop.permute.xlu0 %1287
        %1290 = vset.pattern.permute.xlu0 8
        %1291 = vperm.xlu0 %1290, %v570
        %v1292 = vpop.permute.xlu0 %1291
        %v1294 = vmul.f32 %v791, %v1264
        %v1295 = vmul.f32 %v792, %v1264
        %v1296 = vmul.f32 %v789, %v1268
        %v1297 = vmul.f32 %v790, %v1268
        %v1298 = vmul.f32 %v787, %v1272
        %v1299 = vmul.f32 %v788, %v1272
        %v1300 = vmul.f32 %v785, %v1276
        %v1301 = vmul.f32 %v786, %v1276
        %v1302 = vmul.f32 %v783, %v1280
        %v1303 = vmul.f32 %v784, %v1280
        %v1304 = vmul.f32 %v781, %v1284
        %v1305 = vmul.f32 %v782, %v1284
        %v1306 = vmul.f32 %v795, %v1288
        %v1307 = vmul.f32 %v796, %v1288
        %v1308 = vmul.f32 %v793, %v1292
        %v1309 = vmul.f32 %v794, %v1292
        %s1310 = scalar_lea.vmem %s4, 16
        %v1311 = vld [vmem:[%s1310] ss:$8 sm:$0x3]
        %v1313 = vlaneseq
        %v1314 = vshrl.u32 %v1313, 7
        %v1315 = vsub.s32 0, %v1314
        %v1316 = vrot.slane %v1311, %v1315
        %v1317 = vlaneseq
        %v1318 = vshrl.u32 %v1317, 7
        %v1319 = vsub.s32 1, %v1318
        %v1320 = vrot.slane %v1311, %v1319
        %v1323 = vmul.f32 %v1294, %v1316
        %v1324 = vmul.f32 %v1295, %v1320
        %v1325 = vmul.f32 %v1296, %v1316
        %v1326 = vmul.f32 %v1297, %v1320
        %v1327 = vmul.f32 %v1298, %v1316
        %v1328 = vmul.f32 %v1299, %v1320
        %v1329 = vmul.f32 %v1300, %v1316
        %v1330 = vmul.f32 %v1301, %v1320
        %v1331 = vmul.f32 %v1302, %v1316
        %v1332 = vmul.f32 %v1303, %v1320
        %v1333 = vmul.f32 %v1304, %v1316
        %v1334 = vmul.f32 %v1305, %v1320
        %v1335 = vmul.f32 %v1306, %v1316
        %v1336 = vmul.f32 %v1307, %v1320
        %v1337 = vmul.f32 %v1308, %v1316
        %v1338 = vmul.f32 %v1309, %v1320
        %v1339 = vadd.f32 %v1246, %v1323
        %v1340 = vadd.f32 %v1247, %v1324
        %v1341 = vadd.f32 %v1248, %v1325
        %v1342 = vadd.f32 %v1249, %v1326
        %v1343 = vadd.f32 %v1250, %v1327
        %v1344 = vadd.f32 %v1251, %v1328
        %v1345 = vadd.f32 %v1252, %v1329
        %v1346 = vadd.f32 %v1253, %v1330
        %v1347 = vadd.f32 %v1254, %v1331
        %v1348 = vadd.f32 %v1255, %v1332
        %v1349 = vadd.f32 %v1256, %v1333
        %v1350 = vadd.f32 %v1257, %v1334
        %v1351 = vadd.f32 %v1258, %v1335
        %v1352 = vadd.f32 %v1259, %v1336
        %v1353 = vadd.f32 %v1260, %v1337
        %v1354 = vadd.f32 %v1261, %v1338
        %v1355 = vld [vmem:[%s5] sm:$0x3]
        %v1357 = vlaneseq
        %v1358 = vshrl.u32 %v1357, 7
        %v1359 = vsub.s32 0, %v1358
        %v1360 = vrot.slane %v1355, %v1359
        %v1361 = vlaneseq
        %v1362 = vshrl.u32 %v1361, 7
        %v1363 = vsub.s32 1, %v1362
        %v1364 = vrot.slane %v1355, %v1363
        %v1367 = vadd.f32 %v1339, %v1360
        %v1368 = vadd.f32 %v1340, %v1364
        %v1369 = vadd.f32 %v1341, %v1360
        %v1370 = vadd.f32 %v1342, %v1364
        %v1371 = vadd.f32 %v1343, %v1360
        %v1372 = vadd.f32 %v1344, %v1364
        %v1373 = vadd.f32 %v1345, %v1360
        %v1374 = vadd.f32 %v1346, %v1364
        %v1375 = vadd.f32 %v1347, %v1360
        %v1376 = vadd.f32 %v1348, %v1364
        %v1377 = vadd.f32 %v1349, %v1360
        %v1378 = vadd.f32 %v1350, %v1364
        %v1379 = vadd.f32 %v1351, %v1360
        %v1380 = vadd.f32 %v1352, %v1364
        %v1381 = vadd.f32 %v1353, %v1360
        %v1382 = vadd.f32 %v1354, %v1364
        %v1383 = vmul.f32 %v1367, 0.5
        %v1384 = vmul.f32 %v1368, 0.5
        %v1385 = vmul.f32 %v1369, 0.5
        %v1386 = vmul.f32 %v1370, 0.5
        %v1387 = vmul.f32 %v1371, 0.5
        %v1388 = vmul.f32 %v1372, 0.5
        %v1389 = vmul.f32 %v1373, 0.5
        %v1390 = vmul.f32 %v1374, 0.5
        %v1391 = vmul.f32 %v1375, 0.5
        %v1392 = vmul.f32 %v1376, 0.5
        %v1393 = vmul.f32 %v1377, 0.5
        %v1394 = vmul.f32 %v1378, 0.5
        %v1395 = vmul.f32 %v1379, 0.5
        %v1396 = vmul.f32 %v1380, 0.5
        %v1397 = vmul.f32 %v1381, 0.5
        %v1398 = vmul.f32 %v1382, 0.5
        %v1399 = vmul.f32 %v1367, 0.044715
        %v1400 = vmul.f32 %v1368, 0.044715
        %v1401 = vmul.f32 %v1369, 0.044715
        %v1402 = vmul.f32 %v1370, 0.044715
        %v1403 = vmul.f32 %v1371, 0.044715
        %v1404 = vmul.f32 %v1372, 0.044715
        %v1405 = vmul.f32 %v1373, 0.044715
        %v1406 = vmul.f32 %v1374, 0.044715
        %v1407 = vmul.f32 %v1375, 0.044715
        %v1408 = vmul.f32 %v1376, 0.044715
        %v1409 = vmul.f32 %v1377, 0.044715
        %v1410 = vmul.f32 %v1378, 0.044715
        %v1411 = vmul.f32 %v1379, 0.044715
        %v1412 = vmul.f32 %v1380, 0.044715
        %v1413 = vmul.f32 %v1381, 0.044715
        %v1414 = vmul.f32 %v1382, 0.044715
        %v1415 = vmul.f32 %v1399, %v1367
        %v1416 = vmul.f32 %v1400, %v1368
        %v1417 = vmul.f32 %v1401, %v1369
        %v1418 = vmul.f32 %v1402, %v1370
        %v1419 = vmul.f32 %v1403, %v1371
        %v1420 = vmul.f32 %v1404, %v1372
        %v1421 = vmul.f32 %v1405, %v1373
        %v1422 = vmul.f32 %v1406, %v1374
        %v1423 = vmul.f32 %v1407, %v1375
        %v1424 = vmul.f32 %v1408, %v1376
        %v1425 = vmul.f32 %v1409, %v1377
        %v1426 = vmul.f32 %v1410, %v1378
        %v1427 = vmul.f32 %v1411, %v1379
        %v1428 = vmul.f32 %v1412, %v1380
        %v1429 = vmul.f32 %v1413, %v1381
        %v1430 = vmul.f32 %v1414, %v1382
        %v1431 = vmul.f32 %v1415, %v1367
        %v1432 = vmul.f32 %v1416, %v1368
        %v1433 = vmul.f32 %v1417, %v1369
        %v1434 = vmul.f32 %v1418, %v1370
        %v1435 = vmul.f32 %v1419, %v1371
        %v1436 = vmul.f32 %v1420, %v1372
        %v1437 = vmul.f32 %v1421, %v1373
        %v1438 = vmul.f32 %v1422, %v1374
        %v1439 = vmul.f32 %v1423, %v1375
        %v1440 = vmul.f32 %v1424, %v1376
        %v1441 = vmul.f32 %v1425, %v1377
        %v1442 = vmul.f32 %v1426, %v1378
        %v1443 = vmul.f32 %v1427, %v1379
        %v1444 = vmul.f32 %v1428, %v1380
        %v1445 = vmul.f32 %v1429, %v1381
        %v1446 = vmul.f32 %v1430, %v1382
        %v1447 = vadd.f32 %v1367, %v1431
        %v1448 = vadd.f32 %v1368, %v1432
        %v1449 = vadd.f32 %v1369, %v1433
        %v1450 = vadd.f32 %v1370, %v1434
        %v1451 = vadd.f32 %v1371, %v1435
        %v1452 = vadd.f32 %v1372, %v1436
        %v1453 = vadd.f32 %v1373, %v1437
        %v1454 = vadd.f32 %v1374, %v1438
        %v1455 = vadd.f32 %v1375, %v1439
        %v1456 = vadd.f32 %v1376, %v1440
        %v1457 = vadd.f32 %v1377, %v1441
        %v1458 = vadd.f32 %v1378, %v1442
        %v1459 = vadd.f32 %v1379, %v1443
        %v1460 = vadd.f32 %v1380, %v1444
        %v1461 = vadd.f32 %v1381, %v1445
        %v1462 = vadd.f32 %v1382, %v1446
        %v1463 = vmul.f32 %v1447, 0.7978846
        %v1464 = vmul.f32 %v1448, 0.7978846
        %v1465 = vmul.f32 %v1449, 0.7978846
        %v1466 = vmul.f32 %v1450, 0.7978846
        %v1467 = vmul.f32 %v1451, 0.7978846
        %v1468 = vmul.f32 %v1452, 0.7978846
        %v1469 = vmul.f32 %v1453, 0.7978846
        %v1470 = vmul.f32 %v1454, 0.7978846
        %v1471 = vmul.f32 %v1455, 0.7978846
        %v1472 = vmul.f32 %v1456, 0.7978846
        %v1473 = vmul.f32 %v1457, 0.7978846
        %v1474 = vmul.f32 %v1458, 0.7978846
        %v1475 = vmul.f32 %v1459, 0.7978846
        %v1476 = vmul.f32 %v1460, 0.7978846
        %v1477 = vmul.f32 %v1461, 0.7978846
        %v1478 = vmul.f32 %v1462, 0.7978846
        %v1479 = vtanh.pop %v1463
        %v1480 = vtanh.pop %v1464
        %v1481 = vtanh.pop %v1465
        %v1482 = vtanh.pop %v1466
        %v1483 = vtanh.pop %v1467
        %v1484 = vtanh.pop %v1468
        %v1485 = vtanh.pop %v1469
        %v1486 = vtanh.pop %v1470
        %v1487 = vtanh.pop %v1471
        %v1488 = vtanh.pop %v1472
        %v1489 = vtanh.pop %v1473
        %v1490 = vtanh.pop %v1474
        %v1491 = vtanh.pop %v1475
        %v1492 = vtanh.pop %v1476
        %v1493 = vtanh.pop %v1477
        %v1494 = vtanh.pop %v1478
        %v1495 = vadd.f32 %v1479, 1.0
        %v1496 = vadd.f32 %v1480, 1.0
        %v1497 = vadd.f32 %v1481, 1.0
        %v1498 = vadd.f32 %v1482, 1.0
        %v1499 = vadd.f32 %v1483, 1.0
        %v1500 = vadd.f32 %v1484, 1.0
        %v1501 = vadd.f32 %v1485, 1.0
        %v1502 = vadd.f32 %v1486, 1.0
        %v1503 = vadd.f32 %v1487, 1.0
        %v1504 = vadd.f32 %v1488, 1.0
        %v1505 = vadd.f32 %v1489, 1.0
        %v1506 = vadd.f32 %v1490, 1.0
        %v1507 = vadd.f32 %v1491, 1.0
        %v1508 = vadd.f32 %v1492, 1.0
        %v1509 = vadd.f32 %v1493, 1.0
        %v1510 = vadd.f32 %v1494, 1.0
        %v1511 = vmul.f32 %v1383, %v1495
        %v1512 = vmul.f32 %v1384, %v1496
        %v1513 = vmul.f32 %v1385, %v1497
        %v1514 = vmul.f32 %v1386, %v1498
        %v1515 = vmul.f32 %v1387, %v1499
        %v1516 = vmul.f32 %v1388, %v1500
        %v1517 = vmul.f32 %v1389, %v1501
        %v1518 = vmul.f32 %v1390, %v1502
        %v1519 = vmul.f32 %v1391, %v1503
        %v1520 = vmul.f32 %v1392, %v1504
        %v1521 = vmul.f32 %v1393, %v1505
        %v1522 = vmul.f32 %v1394, %v1506
        %v1523 = vmul.f32 %v1395, %v1507
        %v1524 = vmul.f32 %v1396, %v1508
        %v1525 = vmul.f32 %v1397, %v1509
        %v1526 = vmul.f32 %v1398, %v1510
        %v1527 = vpack.c.bf16 %v1513, %v1511
        %v1528 = vpack.c.bf16 %v1514, %v1512
        %v1529 = vpack.c.bf16 %v1517, %v1515
        %v1530 = vpack.c.bf16 %v1518, %v1516
        %v1531 = vpack.c.bf16 %v1521, %v1519
        %v1532 = vpack.c.bf16 %v1522, %v1520
        %v1533 = vpack.c.bf16 %v1525, %v1523
        %v1534 = vpack.c.bf16 %v1526, %v1524
        %v1535 = vld [vmem:[#allocation7] sm:$0xff]
        %v1536 = vld [vmem:[#allocation7 + $0x8] sm:$0xff]
        %v1537 = vld [vmem:[#allocation7 + $0x10] sm:$0xff]
        %v1538 = vld [vmem:[#allocation7 + $0x18] sm:$0xff]
        %v1539 = vld [vmem:[#allocation7 + $0x20] sm:$0xff]
        %v1540 = vld [vmem:[#allocation7 + $0x28] sm:$0xff]
        %v1541 = vld [vmem:[#allocation7 + $0x30] sm:$0xff]
        %v1542 = vld [vmem:[#allocation7 + $0x38] sm:$0xff]
        %v1543 = vld [vmem:[#allocation7 + $0x40] sm:$0xff]
        %v1544 = vld [vmem:[#allocation7 + $0x48] sm:$0xff]
        %v1545 = vld [vmem:[#allocation7 + $0x50] sm:$0xff]
        %v1546 = vld [vmem:[#allocation7 + $0x58] sm:$0xff]
        %v1547 = vld [vmem:[#allocation7 + $0x60] sm:$0xff]
        %v1548 = vld [vmem:[#allocation7 + $0x68] sm:$0xff]
        %v1549 = vld [vmem:[#allocation7 + $0x70] sm:$0xff]
        %v1550 = vld [vmem:[#allocation7 + $0x78] sm:$0xff]
        %v1551 = vld [vmem:[#allocation7 + $0x80] sm:$0xff]
        %v1552 = vld [vmem:[#allocation7 + $0x88] sm:$0xff]
        %v1553 = vld [vmem:[#allocation7 + $0x90] sm:$0xff]
        %v1554 = vld [vmem:[#allocation7 + $0x98] sm:$0xff]
        %v1555 = vld [vmem:[#allocation7 + $0xa0] sm:$0xff]
        %v1556 = vld [vmem:[#allocation7 + $0xa8] sm:$0xff]
        %v1557 = vld [vmem:[#allocation7 + $0xb0] sm:$0xff]
        %v1558 = vld [vmem:[#allocation7 + $0xb8] sm:$0xff]
        %v1559 = vld [vmem:[#allocation7 + $0xc0] sm:$0xff]
        %v1560 = vld [vmem:[#allocation7 + $0xc8] sm:$0xff]
        %v1561 = vld [vmem:[#allocation7 + $0xd0] sm:$0xff]
        %v1562 = vld [vmem:[#allocation7 + $0xd8] sm:$0xff]
        %v1563 = vld [vmem:[#allocation7 + $0xe0] sm:$0xff]
        %v1564 = vld [vmem:[#allocation7 + $0xe8] sm:$0xff]
        %v1565 = vld [vmem:[#allocation7 + $0xf0] sm:$0xff]
        %v1566 = vld [vmem:[#allocation7 + $0xf8] sm:$0xff]
        %v1567 = vpack.c.bf16 %v1536, %v1535
        %v1568 = vpack.c.bf16 %v1538, %v1537
        %v1569 = vpack.c.bf16 %v1540, %v1539
        %v1570 = vpack.c.bf16 %v1542, %v1541
        %v1571 = vpack.c.bf16 %v1544, %v1543
        %v1572 = vpack.c.bf16 %v1546, %v1545
        %v1573 = vpack.c.bf16 %v1548, %v1547
        %v1574 = vpack.c.bf16 %v1550, %v1549
        %v1575 = vpack.c.bf16 %v1552, %v1551
        %v1576 = vpack.c.bf16 %v1554, %v1553
        %v1577 = vpack.c.bf16 %v1556, %v1555
        %v1578 = vpack.c.bf16 %v1558, %v1557
        %v1579 = vpack.c.bf16 %v1560, %v1559
        %v1580 = vpack.c.bf16 %v1562, %v1561
        %v1581 = vpack.c.bf16 %v1564, %v1563
        %v1582 = vpack.c.bf16 %v1566, %v1565
        %v1583 = vld [vmem:[%s7] sm:$0x1]
        %v1585 = vlaneseq
        %v1586 = vshrl.u32 %v1585, 7
        %v1587 = vsub.s32 0, %v1586
        %v1588 = vrot.slane %v1583, %v1587
        %1590 = vmatprep.subr.bf16.mxu0 0
        %1591 = vmatpush1.bf16.msra.mxu0 %v1574
        %1592 = vmatprep.subr.bf16.mxu0 0
        %1593 = vmatpush1.bf16.msra.mxu0 %v1573
        %1594 = vmatprep.subr.bf16.mxu0 0
        %1595 = vmatpush1.bf16.msra.mxu0 %v1572
        %1596 = vmatprep.subr.bf16.mxu0 0
        %1597 = vmatpush1.bf16.msra.mxu0 %v1571
        %1598 = vmatprep.subr.bf16.mxu0 0
        %1599 = vmatpush1.bf16.msra.mxu0 %v1570
        %1600 = vmatprep.subr.bf16.mxu0 0
        %1601 = vmatpush1.bf16.msra.mxu0 %v1569
        %1602 = vmatprep.subr.bf16.mxu0 0
        %1603 = vmatpush1.bf16.msra.mxu0 %v1568
        %1604 = vmatprep.subr.bf16.mxu0 0
        %1605 = vmatpush1.bf16.msra.mxu0 %v1567
        %1606 = vmatprep.subr.bf16.mxu0 0
        %1607 = vmatpush2.bf16.msra.mxu0 %v1582
        %1608 = vmatprep.subr.bf16.mxu0 0
        %1609 = vmatpush2.bf16.msra.mxu0 %v1581
        %1610 = vmatprep.subr.bf16.mxu0 0
        %1611 = vmatpush2.bf16.msra.mxu0 %v1580
        %1612 = vmatprep.subr.bf16.mxu0 0
        %1613 = vmatpush2.bf16.msra.mxu0 %v1579
        %1614 = vmatprep.subr.bf16.mxu0 0
        %1615 = vmatpush2.bf16.msra.mxu0 %v1578
        %1616 = vmatprep.subr.bf16.mxu0 0
        %1617 = vmatpush2.bf16.msra.mxu0 %v1577
        %1618 = vmatprep.subr.bf16.mxu0 0
        %1619 = vmatpush2.bf16.msra.mxu0 %v1576
        %1620 = vmatprep.subr.bf16.mxu0 0
        %1621 = vmatpush2.bf16.msra.mxu0 %v1575
        %1622 = vmatprep.mubr.bf16.mxu0 %v1528
        %1623 = vmatmul.mubr.bf16.gmra.mxu0 %v1527
        %v1624 = vpop.f32.mrf.mxu0
        %v1625 = vadd.f32 %v1588, %v1624
        %v1626 = vpop.f32.mrf.mxu0
        %v1627 = vpop.f32.mrf.mxu0
        %v1628 = vadd.f32 %v1588, %v1627
        %v1629 = vpop.f32.mrf.mxu0
        %1630 = vmatprep.mubr.bf16.mxu0 %v1530
        %1631 = vmatmul.mubr.bf16.gmra.mxu0 %v1529
        %v1632 = vpop.f32.mrf.mxu0
        %v1633 = vadd.f32 %v1588, %v1632
        %v1634 = vpop.f32.mrf.mxu0
        %v1635 = vpop.f32.mrf.mxu0
        %v1636 = vadd.f32 %v1588, %v1635
        %v1637 = vpop.f32.mrf.mxu0
        %1638 = vmatprep.mubr.bf16.mxu0 %v1532
        %1639 = vmatmul.mubr.bf16.gmra.mxu0 %v1531
        %v1640 = vpop.f32.mrf.mxu0
        %v1641 = vadd.f32 %v1588, %v1640
        %v1642 = vpop.f32.mrf.mxu0
        %v1643 = vpop.f32.mrf.mxu0
        %v1644 = vadd.f32 %v1588, %v1643
        %v1645 = vpop.f32.mrf.mxu0
        %1646 = vmatprep.mubr.bf16.mxu0 %v1534
        %1647 = vmatmul.mubr.bf16.gmra.mxu0 %v1533
        %v1648 = vpop.f32.mrf.mxu0
        %v1649 = vadd.f32 %v1588, %v1648
        %v1650 = vpop.f32.mrf.mxu0
        %v1651 = vpop.f32.mrf.mxu0
        %v1652 = vadd.f32 %v1588, %v1651
        %v1653 = vpop.f32.mrf.mxu0
        %1654 = vdwg.mxu0
        %1655 = vst [vmem:[%s352] sm:$0xff] %v1625
        %1656 = vst [vmem:[%s352 + $0x8] sm:$0xff] %v1628
        %1657 = vst [vmem:[%s352 + $0x10] sm:$0xff] %v1633
        %1658 = vst [vmem:[%s352 + $0x18] sm:$0xff] %v1636
        %1659 = vst [vmem:[%s352 + $0x20] sm:$0xff] %v1641
        %1660 = vst [vmem:[%s352 + $0x28] sm:$0xff] %v1644
        %1661 = vst [vmem:[%s352 + $0x30] sm:$0xff] %v1649
        %1662 = vst [vmem:[%s352 + $0x38] sm:$0xff] %v1652
        %s1663 = sand.u32 %s207, 1
        %s1664 = scalar_lea.sflag [#allocation4], %s1663
        %s1665 = sand.u32 %s207, 1
        %s1666 = smul.addr %s1665, 64
        %s1667 = scalar_lea.vmem [#allocation8], %s1666
        // Predicated region
        $region65: #{tpu_custom_call.1} parent=51 // pred_check
          %p1668 = pneg %p217
        $region66: #{tpu_custom_call.1} parent=51 // pred_check_branch
          %1670 = sbr.rel (%p1668) target = $region68
        $region67: #{tpu_custom_call.1} parent=51 // pred_region
          %s1672 = ssub.s32 1024, 1024
          %1673 = vsyncadd %s1664, %s1672
          %s1674 = smul.addr %s26, 8
          %s1675 = smul.addr %s1674, 128
          %s1676 = scalar_lea.hbm %s8, %s1675
          %s1677 = sshll.u32 %s1667, 4
          %s1678 = int_to_ptr.vmem [resolvable:$true] %s1677
          %1683 = dma.vmem_to_hbm [thread:$0]  %s1678, 1024, %s1676, %s1664, 128, 128, 8
        $region68: #{tpu_custom_call.1} parent=51 // pred_fallthru
          _
      $region52: #{tpu_custom_call.1} parent=5 // pred_fallthru
        _
      %p1684 = scmp.le.s32.totalorder 2, %s21
      // Predicated region
      $region69: #{tpu_custom_call.1} parent=5 // pred_check
        %p1685 = pneg %p1684
      $region70: #{tpu_custom_call.1} parent=5 // pred_check_branch
        %1687 = sbr.rel (%p1685) target = $region72
      $region71: #{tpu_custom_call.1} parent=5 // pred_region
        %s1688 = ssub.s32 %s21, 2
        // Predicated region
        $region73: #{tpu_custom_call.1} parent=71 // pred_check
          %p1689 = pneg %p223
        $region74: #{tpu_custom_call.1} parent=71 // pred_check_branch
          %1691 = sbr.rel (%p1689) target = $region76
        $region75: #{tpu_custom_call.1} parent=71 // pred_region
          %s1692 = sand.u32 %s208, 1
          %s1693 = scalar_lea.sflag [#allocation4], %s1692
          %s1694 = sand.u32 %s208, 1
          %s1695 = smul.addr %s1694, 64
          %s1696 = scalar_lea.vmem [#allocation8], %s1695
          %1697 = dma.done %s1693, 1024
        $region76: #{tpu_custom_call.1} parent=71 // pred_fallthru
          _
      $region72: #{tpu_custom_call.1} parent=5 // pred_fallthru
        _
    $region6: #{tpu_custom_call.1} parent=1 // loop_footer
      %s25 = sadd.s32 1, %s21
    $region7: #{tpu_custom_call.1} parent=1 // loop_footer_branch
      %20 = sbr.rel target = $region3
    $region8: #{tpu_custom_call.1} parent=1 // loop_exit
      _
    %1698 = vsyncpa [#allocation3], 1
    %s1699 = scalar_lea.sflag [#allocation3], 1
    %1700 = vsyncpa %s1699, 1
    %1701 = vsyncpa [#allocation6], 1
    %1702 = vsyncpa [#allocation4], 1
    %s1703 = scalar_lea.sflag [#allocation4], 1
    %1704 = vsyncpa %s1703, 1

</llo_original>
